<compile_context>
chip_gen: v6e
topology: v6e:2x2x1
jax: 0.10.0
libtpu: 0.0.40
codegen_flags: <defaults>
</compile_context>

<pallas_src>
import functools

import numpy as np

import jax
import jax.numpy as jnp
from jax import lax
from jax.experimental import pallas as pl
from jax.experimental.pallas import tpu as pltpu


_LANE = 128
_DEFAULT_STEP_BUDGET = 24 * 1024 * 1024   # target per-grid-step VMEM working set (bytes)
_VMEM_LIMIT_BYTES = 48 * 1024 * 1024      # scoped VMEM limit; < 64 MiB physical on v7x


def _pooled_block(x_ref, xp_ref, inv_cnt_ref, *, pool_type, k, s, p, h, w, out_h, out_w):
    """Pool one (nb, h, w, tc) channels-last block; returns f32 (nb, out_h, out_w, tc)."""
    op = jnp.maximum if pool_type == "max" else jnp.add

    if p > 0:
        # In-kernel spatial padding in a VMEM scratch.  The left pad is rounded up to a
        # multiple of 8 sublanes so the interior store is fully aligned (H offset is an
        # outer dim -> free addressing; W offset p8 is 8-aligned).
        pad_val = -jnp.inf if pool_type == "max" else 0.0
        xp_ref[...] = jnp.full(xp_ref.shape, pad_val, xp_ref.dtype)
        p8 = xp_ref.shape[2] - (w + p)              # aligned left-pad width
        xp_ref[:, p:p + h, p8:p8 + w, :] = x_ref[...]
        x = xp_ref[...]
        w0 = p8 - p                                  # scratch column of padded column 0
    else:
        x = x_ref[...]
        w0 = 0

    # Separable pooling (2k taps instead of k^2).  W taps at unit offsets followed by a
    # single strided downsample (avoids k strided sublane slices when stride > 1); the
    # taps stay in the input dtype and are cast to f32 only afterwards.
    full_w = (w + 2 * p) - k + 1
    tmp = lax.slice_in_dim(x, w0, w0 + full_w, stride=1, axis=2)
    for kj in range(1, k):
        tmp = op(tmp, lax.slice_in_dim(x, w0 + kj, w0 + kj + full_w, stride=1, axis=2))
    if s > 1:
        tmp = lax.slice_in_dim(tmp, 0, (out_w - 1) * s + 1, stride=s, axis=2)

    # H taps: axis 1 is an outer dim, strided slices are cheap addressing.
    h_span = (out_h - 1) * s + 1
    pooled = lax.slice_in_dim(tmp, 0, h_span, stride=s, axis=1)
    for ki in range(1, k):
        pooled = op(pooled, lax.slice_in_dim(tmp, ki, ki + h_span, stride=s, axis=1))

    pooled = pooled.astype(jnp.float32)
    if pool_type == "avg":
        # count_include_pad=False divisor, pre-broadcast to lane width -> plain vmul.
        pooled = pooled * inv_cnt_ref[...]
    return pooled


def _pool_bn_fused_kernel(*refs, pool_type, k, s, p, h, w, out_h, out_w, eps):
    """Single-pass kernel: pooling + BN batch stats + folded affine (whole batch per step)."""
    it = iter(refs)
    x_ref = next(it)
    inv_cnt_ref = next(it) if pool_type == "avg" else None
    gamma_ref = next(it)
    beta_ref = next(it)
    out_ref = next(it)
    xp_ref = next(it) if p > 0 else None

    pooled = _pooled_block(x_ref, xp_ref, inv_cnt_ref, pool_type=pool_type, k=k, s=s, p=p,
                           h=h, w=w, out_h=out_h, out_w=out_w)
    n = pooled.shape[0]
    inv_nhw = jnp.float32(1.0 / (n * out_h * out_w))
    # One-pass batch stats: sum and sum-of-squares (saves the (x - mean)^2 pass).
    s1 = jnp.sum(pooled, axis=(0, 1, 2), keepdims=True)                   # (1,1,1,tc)
    s2 = jnp.sum(pooled * pooled, axis=(0, 1, 2), keepdims=True)
    mean = s1 * inv_nhw
    var = jnp.maximum(s2 * inv_nhw - mean * mean, 0.0)
    # Folded affine: out = pooled * scale + shift.
    scale = gamma_ref[...] * lax.rsqrt(var + jnp.float32(eps))
    shift = beta_ref[...] - mean * scale
    out_ref[...] = (pooled * scale + shift).astype(out_ref.dtype)


def _pool_stats_kernel(*refs, pool_type, k, s, p, h, w, out_h, out_w):
    """Split-path pass 1: pooling + per-(batch-tile, channel) partial sum / sum-of-squares."""
    it = iter(refs)
    x_ref = next(it)
    inv_cnt_ref = next(it) if pool_type == "avg" else None
    pooled_ref = next(it)
    sum_ref = next(it)
    sq_ref = next(it)
    xp_ref = next(it) if p > 0 else None

    pooled = _pooled_block(x_ref, xp_ref, inv_cnt_ref, pool_type=pool_type, k=k, s=s, p=p,
                           h=h, w=w, out_h=out_h, out_w=out_w)
    pooled_ref[...] = pooled.astype(pooled_ref.dtype)
    sum_ref[...] = jnp.sum(pooled, axis=(0, 1, 2), keepdims=True)         # (1,1,1,tc)
    sq_ref[...] = jnp.sum(pooled * pooled, axis=(0, 1, 2), keepdims=True)


def _bn_affine_kernel(pooled_ref, scale_ref, shift_ref, out_ref):
    """Split-path pass 2: apply folded per-channel affine."""
    out_ref[...] = (pooled_ref[...].astype(jnp.float32) * scale_ref[...]
                    + shift_ref[...]).astype(out_ref.dtype)


def pool_bn(x, gamma, beta, *, pool_type, kernel_size, stride, padding, eps=1e-5,
            in_layout="NCHW", out_layout="NCHW",
            step_vmem_budget=_DEFAULT_STEP_BUDGET):
    """PoolBN forward (training-mode BN batch stats).

    x: (N, C, H, W) if in_layout == "NCHW" else (N, H, W, C); gamma/beta: (C,).
    Returns NCHW by default; pass in_layout/out_layout="NHWC" to skip the layout glue
    passes entirely (the kernel itself is channels-last).
    """
    pool_type = pool_type.lower()
    if pool_type not in ("avg", "max"):
        raise ValueError(pool_type)
    assert jnp.issubdtype(x.dtype, jnp.floating), "PoolBN kernel expects a float dtype"
    assert padding <= kernel_size // 2, "PyTorch pooling requires padding <= kernel_size // 2"

    if in_layout == "NCHW":
        n, c, h, w = x.shape
        xt = jnp.transpose(x, (0, 2, 3, 1))          # the single wrapper layout pass
    else:
        n, h, w, c = x.shape
        xt = x

    k, s, p = kernel_size, stride, padding
    out_h = (h + 2 * p - k) // s + 1
    out_w = (w + 2 * p - k) // s + 1

    # Channel padding only when C > 128 and not already a lane multiple.  Tiny C uses the
    # full (masked) channel dim directly, so we never move 128/C x padded data through HBM.
    if c > _LANE and c % _LANE != 0:
        cp = ((c + _LANE - 1) // _LANE) * _LANE
        xt = jnp.pad(xt, ((0, 0), (0, 0), (0, 0), (0, cp - c)))
    else:
        cp = c

    itemsize = np.dtype(x.dtype).itemsize
    hp = h + 2 * p
    wpad = ((-(-p // 8)) * 8 + w + p) if p > 0 else w    # in-kernel pad-scratch width
    full_w = (w + 2 * p) - k + 1

    if cp <= _LANE:
        tc_cands = [cp]
    else:
        tc_cands = [t for t in (512, 384, 256, 128) if cp % t == 0]

    def step_bytes(nb, tc):
        b = 2 * nb * h * w * tc * itemsize               # x block, double-buffered
        if p > 0:
            b += nb * hp * wpad * tc * itemsize          # in-kernel pad scratch
        b += nb * hp * full_w * tc * itemsize            # W-tap temporary
        b += nb * out_h * out_w * tc * 4                 # pooled (f32)
        b += 2 * nb * out_h * out_w * tc * itemsize      # output block, double-buffered
        if pool_type == "avg":
            b += 2 * out_h * out_w * tc * 4              # inv-count block
        return b

    # Prefer the fused single-pass kernel (whole batch per step) when it fits the budget;
    # otherwise tile the batch and fall back to the two-pass (stats then affine) path.
    fused, tc, nb = False, tc_cands[-1], 1
    for t in tc_cands:                                   # largest channel tile first
        if step_bytes(n, t) <= step_vmem_budget:
            fused, tc, nb = True, t, n
            break
    if not fused:
        tc = tc_cands[-1]
        for d in range(n, 0, -1):
            if n % d == 0 and step_bytes(d, tc) <= step_vmem_budget:
                nb = d
                break
        # TODO(synk): add an H-row grid axis if a single image still exceeds the budget.

    c_tiles = cp // tc
    n_tiles = n // nb

    # count_include_pad=False divisor, precomputed statically and pre-broadcast to the lane
    # width so the in-kernel multiply is a full-vreg vmul (block index is constant -> the
    # pipeline fetches it once, not per step).
    inv_cnt = None
    if pool_type == "avg":
        hi = np.arange(out_h) * s
        wi = np.arange(out_w) * s
        h_cnt = np.minimum(hi + k, p + h) - np.maximum(hi, p)
        w_cnt = np.minimum(wi + k, p + w) - np.maximum(wi, p)
        cnt = np.outer(h_cnt, w_cnt).astype(np.float32)
        inv_cnt = jnp.asarray(
            np.broadcast_to((1.0 / cnt)[None, :, :, None], (1, out_h, out_w, tc)).copy())

    gamma_f = jnp.pad(gamma.astype(jnp.float32), (0, cp - c))
    beta_f = jnp.pad(beta.astype(jnp.float32), (0, cp - c))

    scratch = [pltpu.VMEM((nb, hp, wpad, tc), x.dtype)] if p > 0 else []
    statics = dict(pool_type=pool_type, k=k, s=s, p=p, h=h, w=w, out_h=out_h, out_w=out_w)

    if fused:
        kernel = functools.partial(_pool_bn_fused_kernel, eps=eps, **statics)
        inputs = [xt]
        in_specs = [pl.BlockSpec((n, h, w, tc), lambda ci: (0, 0, 0, ci))]
        if pool_type == "avg":
            inputs.append(inv_cnt)
            in_specs.append(pl.BlockSpec((1, out_h, out_w, tc), lambda ci: (0, 0, 0, 0)))
        inputs += [gamma_f.reshape(1, 1, 1, cp), beta_f.reshape(1, 1, 1, cp)]
        in_specs += [pl.BlockSpec((1, 1, 1, tc), lambda ci: (0, 0, 0, ci))] * 2
        out_nhwc = pl.pallas_call(
            kernel,
            out_shape=jax.ShapeDtypeStruct((n, out_h, out_w, cp), x.dtype),
            grid=(c_tiles,),
            in_specs=in_specs,
            out_specs=pl.BlockSpec((n, out_h, out_w, tc), lambda ci: (0, 0, 0, ci)),
            scratch_shapes=scratch,
            compiler_params=pltpu.CompilerParams(
                dimension_semantics=("parallel",),
                vmem_limit_bytes=_VMEM_LIMIT_BYTES),
        )(*inputs)
    else:
        # Pass 1: pooling + per-(batch-tile, channel) partial sums for the BN batch stats.
        kernel = functools.partial(_pool_stats_kernel, **statics)
        inputs = [xt]
        in_specs = [pl.BlockSpec((nb, h, w, tc), lambda ci, ni: (ni, 0, 0, ci))]
        if pool_type == "avg":
            inputs.append(inv_cnt)
            in_specs.append(pl.BlockSpec((1, out_h, out_w, tc), lambda ci, ni: (0, 0, 0, 0)))
        pooled, psum, psq = pl.pallas_call(
            kernel,
            out_shape=(jax.ShapeDtypeStruct((n, out_h, out_w, cp), x.dtype),
                       jax.ShapeDtypeStruct((n_tiles, 1, 1, cp), jnp.float32),
                       jax.ShapeDtypeStruct((n_tiles, 1, 1, cp), jnp.float32)),
            grid=(c_tiles, n_tiles),
            in_specs=in_specs,
            out_specs=(pl.BlockSpec((nb, out_h, out_w, tc), lambda ci, ni: (ni, 0, 0, ci)),
                       pl.BlockSpec((1, 1, 1, tc), lambda ci, ni: (ni, 0, 0, ci)),
                       pl.BlockSpec((1, 1, 1, tc), lambda ci, ni: (ni, 0, 0, ci))),
            scratch_shapes=scratch,
            compiler_params=pltpu.CompilerParams(
                dimension_semantics=("parallel", "parallel"),
                vmem_limit_bytes=_VMEM_LIMIT_BYTES),
        )(*inputs)

        # Tiny C-sized reduction + folded affine parameters (plain XLA, negligible).
        cnt_total = jnp.float32(n * out_h * out_w)
        mean = jnp.sum(psum, axis=0).reshape(cp) / cnt_total
        var = jnp.maximum(jnp.sum(psq, axis=0).reshape(cp) / cnt_total - mean * mean, 0.0)
        scale = gamma_f * lax.rsqrt(var + jnp.float32(eps))
        shift = beta_f - mean * scale

        # Pass 2: apply the folded per-channel affine.
        out_nhwc = pl.pallas_call(
            _bn_affine_kernel,
            out_shape=jax.ShapeDtypeStruct((n, out_h, out_w, cp), x.dtype),
            grid=(c_tiles, n_tiles),
            in_specs=[pl.BlockSpec((nb, out_h, out_w, tc), lambda ci, ni: (ni, 0, 0, ci)),
                      pl.BlockSpec((1, 1, 1, tc), lambda ci, ni: (0, 0, 0, ci)),
                      pl.BlockSpec((1, 1, 1, tc), lambda ci, ni: (0, 0, 0, ci))],
            out_specs=pl.BlockSpec((nb, out_h, out_w, tc), lambda ci, ni: (ni, 0, 0, ci)),
            compiler_params=pltpu.CompilerParams(
                dimension_semantics=("parallel", "parallel"),
                vmem_limit_bytes=_VMEM_LIMIT_BYTES),
        )(pooled, scale.reshape(1, 1, 1, cp), shift.reshape(1, 1, 1, cp))

    if cp != c:
        out_nhwc = out_nhwc[..., :c]
    if out_layout == "NHWC":
        return out_nhwc                     # avoids one extra full HBM pass
    return jnp.transpose(out_nhwc, (0, 3, 1, 2))


def pool_bn_ref(x, gamma, beta, *, pool_type, kernel_size, stride, padding, eps=1e-5):
    """Pure-JAX reference (mirrors PyTorch PoolBN forward in training mode, NCHW)."""
    pads = ((0, 0), (0, 0), (padding, padding), (padding, padding))
    win = (1, 1, kernel_size, kernel_size)
    strides = (1, 1, stride, stride)
    if pool_type == "max":
        pooled = lax.reduce_window(x, -jnp.inf, lax.max, win, strides, pads)
    else:
        ssum = lax.reduce_window(x, 0.0, lax.add, win, strides, pads)
        cnt = lax.reduce_window(jnp.ones_like(x), 0.0, lax.add, win, strides, pads)
        pooled = ssum / cnt   # count_include_pad=False (matches DARTS PoolBN)
    mean = pooled.mean(axis=(0, 2, 3), keepdims=True)
    var = pooled.var(axis=(0, 2, 3), keepdims=True)
    return ((pooled - mean) * lax.rsqrt(var + eps) * gamma.reshape(1, -1, 1, 1)
            + beta.reshape(1, -1, 1, 1))


if __name__ == "__main__":
    key = jax.random.PRNGKey(0)
    kx, kg, kb = jax.random.split(key, 3)

    N, C, H, W = 2, 4, 16, 16
    x = jax.random.normal(kx, (N, C, H, W), jnp.float32)
    gamma = 1.0 + 0.1 * jax.random.normal(kg, (C,), jnp.float32)
    beta = 0.1 * jax.random.normal(kb, (C,), jnp.float32)

    configs = [
        dict(pool_type="avg", kernel_size=3, stride=1, padding=1),
        dict(pool_type="max", kernel_size=3, stride=1, padding=1),
        dict(pool_type="avg", kernel_size=3, stride=2, padding=1),
        dict(pool_type="max", kernel_size=3, stride=2, padding=1),
    ]
    for cfg in configs:
        out = jax.block_until_ready(pool_bn(x, gamma, beta, **cfg))
        ref = pool_bn_ref(x, gamma, beta, **cfg)
        assert out.shape == ref.shape, cfg
        assert jnp.allclose(out, ref, rtol=1e-4, atol=1e-4), cfg

    # Exercise the VMEM-bounded split path (batch-tiled stats + affine kernels) by forcing
    # a tiny per-step budget.
    cfg = dict(pool_type="avg", kernel_size=3, stride=1, padding=1)
    out = jax.block_until_ready(
        pool_bn(x, gamma, beta, step_vmem_budget=16 * 1024, **cfg))
    ref = pool_bn_ref(x, gamma, beta, **cfg)
    assert jnp.allclose(out, ref, rtol=1e-4, atol=1e-4)

    print("KERNEL_OK")
</pallas_src>

<mosaic_0001>
module attributes {stable_mosaic.version = 11 : i64} {
  func.func @_pool_bn_fused_kernel(%arg0: i32, %arg1: memref<2x16x16x4xf32, #tpu.memory_space<vmem>>, %arg2: memref<1x16x16x4xf32, #tpu.memory_space<vmem>>, %arg3: memref<1x1x1x4xf32, #tpu.memory_space<vmem>>, %arg4: memref<1x1x1x4xf32, #tpu.memory_space<vmem>>, %arg5: memref<2x16x16x4xf32, #tpu.memory_space<vmem>>, %arg6: memref<2x18x25x4xf32, #tpu.memory_space<vmem>>) attributes {dimension_semantics = [#tpu.dimension_semantics<parallel>], iteration_bounds = array<i64: 1>, scalar_prefetch = 0 : i64, scratch_operands = 1 : i64, tpu.core_type = #tpu.core_type<tc>, window_params = [{transform_indices = @transform_0, window_bounds = array<i64: 2, 16, 16, 4>}, {pipeline_mode = #tpu.pipeline_mode<synchronous>, transform_indices = @transform_1, window_bounds = array<i64: 1, 16, 16, 4>}, {transform_indices = @transform_2, window_bounds = array<i64: 1, 1, 1, 4>}, {transform_indices = @transform_3, window_bounds = array<i64: 1, 1, 1, 4>}, {transform_indices = @transform_4, window_bounds = array<i64: 2, 16, 16, 4>}]} {
    %cst = arith.constant 0.000000e+00 : f32
    %0 = vector.broadcast %cst : f32 to vector<2x18x25x4xf32>
    %c0 = arith.constant 0 : index
    %c0_0 = arith.constant 0 : index
    %c0_1 = arith.constant 0 : index
    %c0_2 = arith.constant 0 : index
    %1 = vector.load %arg6[%c0, %c0_0, %c0_1, %c0_2] : memref<2x18x25x4xf32, #tpu.memory_space<vmem>>, vector<2x18x25x4xf32>
    tpu.vector_store %arg6[%c0, %c0_0, %c0_1, %c0_2], %0 {strides = array<i32>} : memref<2x18x25x4xf32, #tpu.memory_space<vmem>>, vector<2x18x25x4xf32>,
    %c0_3 = arith.constant 0 : index
    %c0_4 = arith.constant 0 : index
    %c0_5 = arith.constant 0 : index
    %c0_6 = arith.constant 0 : index
    %2 = vector.load %arg1[%c0_3, %c0_4, %c0_5, %c0_6] : memref<2x16x16x4xf32, #tpu.memory_space<vmem>>, vector<2x16x16x4xf32>
    %c0_7 = arith.constant 0 : index
    %c1 = arith.constant 1 : index
    %c8 = arith.constant 8 : index
    %c0_8 = arith.constant 0 : index
    %3 = vector.load %arg6[%c0_7, %c1, %c8, %c0_8] : memref<2x18x25x4xf32, #tpu.memory_space<vmem>>, vector<2x16x16x4xf32>
    tpu.vector_store %arg6[%c0_7, %c1, %c8, %c0_8], %2 {strides = array<i32>} : memref<2x18x25x4xf32, #tpu.memory_space<vmem>>, vector<2x16x16x4xf32>,
    %c0_9 = arith.constant 0 : index
    %c0_10 = arith.constant 0 : index
    %c0_11 = arith.constant 0 : index
    %c0_12 = arith.constant 0 : index
    %4 = vector.load %arg6[%c0_9, %c0_10, %c0_11, %c0_12] : memref<2x18x25x4xf32, #tpu.memory_space<vmem>>, vector<2x18x25x4xf32>
    %5 = vector.extract_strided_slice %4 {offsets = [0, 0, 7, 0], sizes = [2, 18, 16, 4], strides = [1, 1, 1, 1]} : vector<2x18x25x4xf32> to vector<2x18x16x4xf32>
    %6 = vector.extract_strided_slice %4 {offsets = [0, 0, 8, 0], sizes = [2, 18, 16, 4], strides = [1, 1, 1, 1]} : vector<2x18x25x4xf32> to vector<2x18x16x4xf32>
    %7 = arith.addf %5, %6 : vector<2x18x16x4xf32>
    %8 = vector.extract_strided_slice %4 {offsets = [0, 0, 9, 0], sizes = [2, 18, 16, 4], strides = [1, 1, 1, 1]} : vector<2x18x25x4xf32> to vector<2x18x16x4xf32>
    %9 = arith.addf %7, %8 : vector<2x18x16x4xf32>
    %10 = vector.extract_strided_slice %9 {offsets = [0, 0, 0, 0], sizes = [2, 16, 16, 4], strides = [1, 1, 1, 1]} : vector<2x18x16x4xf32> to vector<2x16x16x4xf32>
    %11 = vector.extract_strided_slice %9 {offsets = [0, 1, 0, 0], sizes = [2, 16, 16, 4], strides = [1, 1, 1, 1]} : vector<2x18x16x4xf32> to vector<2x16x16x4xf32>
    %12 = arith.addf %10, %11 : vector<2x16x16x4xf32>
    %13 = vector.extract_strided_slice %9 {offsets = [0, 2, 0, 0], sizes = [2, 16, 16, 4], strides = [1, 1, 1, 1]} : vector<2x18x16x4xf32> to vector<2x16x16x4xf32>
    %14 = arith.addf %12, %13 : vector<2x16x16x4xf32>
    %c0_13 = arith.constant 0 : index
    %c0_14 = arith.constant 0 : index
    %c0_15 = arith.constant 0 : index
    %c0_16 = arith.constant 0 : index
    %15 = vector.load %arg2[%c0_13, %c0_14, %c0_15, %c0_16] : memref<1x16x16x4xf32, #tpu.memory_space<vmem>>, vector<1x16x16x4xf32>
    %16 = vector.broadcast %15 : vector<1x16x16x4xf32> to vector<2x16x16x4xf32>
    %17 = arith.mulf %14, %16 : vector<2x16x16x4xf32>
    %cst_17 = arith.constant dense<0.000000e+00> : vector<4xf32>
    %18 = vector.multi_reduction <add>, %17, %cst_17 [0, 1, 2] : vector<2x16x16x4xf32> to vector<4xf32>
    %19 = vector.shape_cast %18 : vector<4xf32> to vector<1x1x1x4xf32>
    %20 = arith.mulf %17, %17 : vector<2x16x16x4xf32>
    %cst_18 = arith.constant dense<0.000000e+00> : vector<4xf32>
    %21 = vector.multi_reduction <add>, %20, %cst_18 [0, 1, 2] : vector<2x16x16x4xf32> to vector<4xf32>
    %22 = vector.shape_cast %21 : vector<4xf32> to vector<1x1x1x4xf32>
    %cst_19 = arith.constant 0.001953125 : f32
    %23 = vector.broadcast %cst_19 : f32 to vector<1x1x1x4xf32>
    %24 = arith.mulf %19, %23 : vector<1x1x1x4xf32>
    %cst_20 = arith.constant 0.001953125 : f32
    %25 = vector.broadcast %cst_20 : f32 to vector<1x1x1x4xf32>
    %26 = arith.mulf %22, %25 : vector<1x1x1x4xf32>
    %27 = arith.mulf %24, %24 : vector<1x1x1x4xf32>
    %28 = arith.subf %26, %27 : vector<1x1x1x4xf32>
    %cst_21 = arith.constant 0.000000e+00 : f32
    %29 = vector.broadcast %cst_21 : f32 to vector<1x1x1x4xf32>
    %30 = arith.maximumf %28, %29 : vector<1x1x1x4xf32>
    %c0_22 = arith.constant 0 : index
    %c0_23 = arith.constant 0 : index
    %c0_24 = arith.constant 0 : index
    %c0_25 = arith.constant 0 : index
    %31 = vector.load %arg3[%c0_22, %c0_23, %c0_24, %c0_25] : memref<1x1x1x4xf32, #tpu.memory_space<vmem>>, vector<1x1x1x4xf32>
    %cst_26 = arith.constant 9.99999974E-6 : f32
    %32 = vector.broadcast %cst_26 : f32 to vector<1x1x1x4xf32>
    %33 = arith.addf %30, %32 : vector<1x1x1x4xf32>
    %34 = math.rsqrt %33 : vector<1x1x1x4xf32>
    %35 = arith.mulf %31, %34 : vector<1x1x1x4xf32>
    %c0_27 = arith.constant 0 : index
    %c0_28 = arith.constant 0 : index
    %c0_29 = arith.constant 0 : index
    %c0_30 = arith.constant 0 : index
    %36 = vector.load %arg4[%c0_27, %c0_28, %c0_29, %c0_30] : memref<1x1x1x4xf32, #tpu.memory_space<vmem>>, vector<1x1x1x4xf32>
    %37 = arith.mulf %24, %35 : vector<1x1x1x4xf32>
    %38 = arith.subf %36, %37 : vector<1x1x1x4xf32>
    %39 = vector.broadcast %35 : vector<1x1x1x4xf32> to vector<2x16x16x4xf32>
    %40 = arith.mulf %17, %39 : vector<2x16x16x4xf32>
    %41 = vector.broadcast %38 : vector<1x1x1x4xf32> to vector<2x16x16x4xf32>
    %42 = arith.addf %40, %41 : vector<2x16x16x4xf32>
    %c0_31 = arith.constant 0 : index
    %c0_32 = arith.constant 0 : index
    %c0_33 = arith.constant 0 : index
    %c0_34 = arith.constant 0 : index
    %43 = vector.load %arg5[%c0_31, %c0_32, %c0_33, %c0_34] : memref<2x16x16x4xf32, #tpu.memory_space<vmem>>, vector<2x16x16x4xf32>
    tpu.vector_store %arg5[%c0_31, %c0_32, %c0_33, %c0_34], %42 {strides = array<i32>} : memref<2x16x16x4xf32, #tpu.memory_space<vmem>>, vector<2x16x16x4xf32>,
    return
  }
  func.func @transform_0(%arg0: i32) -> (i32, i32, i32, i32) {
    %c0_i32 = arith.constant 0 : i32
    %c0_i32_0 = arith.constant 0 : i32
    %c0_i32_1 = arith.constant 0 : i32
    %c0_i32_2 = arith.constant 0 : i32
    return %c0_i32, %c0_i32_0, %c0_i32_1, %arg0 : i32, i32, i32, i32
  }
  func.func @transform_1(%arg0: i32) -> (i32, i32, i32, i32) {
    %c0_i32 = arith.constant 0 : i32
    %c0_i32_0 = arith.constant 0 : i32
    %c0_i32_1 = arith.constant 0 : i32
    %c0_i32_2 = arith.constant 0 : i32
    %c0_i32_3 = arith.constant 0 : i32
    return %c0_i32, %c0_i32_0, %c0_i32_1, %c0_i32_2 : i32, i32, i32, i32
  }
  func.func @transform_2(%arg0: i32) -> (i32, i32, i32, i32) {
    %c0_i32 = arith.constant 0 : i32
    %c0_i32_0 = arith.constant 0 : i32
    %c0_i32_1 = arith.constant 0 : i32
    %c0_i32_2 = arith.constant 0 : i32
    return %c0_i32, %c0_i32_0, %c0_i32_1, %arg0 : i32, i32, i32, i32
  }
  func.func @transform_3(%arg0: i32) -> (i32, i32, i32, i32) {
    %c0_i32 = arith.constant 0 : i32
    %c0_i32_0 = arith.constant 0 : i32
    %c0_i32_1 = arith.constant 0 : i32
    %c0_i32_2 = arith.constant 0 : i32
    return %c0_i32, %c0_i32_0, %c0_i32_1, %arg0 : i32, i32, i32, i32
  }
  func.func @transform_4(%arg0: i32) -> (i32, i32, i32, i32) {
    %c0_i32 = arith.constant 0 : i32
    %c0_i32_0 = arith.constant 0 : i32
    %c0_i32_1 = arith.constant 0 : i32
    %c0_i32_2 = arith.constant 0 : i32
    return %c0_i32, %c0_i32_0, %c0_i32_1, %arg0 : i32, i32, i32, i32
  }
}

</mosaic_0001>

<llo_original>
// kernel: tpu_custom_call.1
$region0: #{tpu_custom_call.1}
  #allocation0 [shape = 'u32[]', space=smem, size = 0x4, offset = 0x4, fixed_abs, tag = 'smem constant byte address 0x4 - core index']
  #allocation1 [shape = 'u32[144,128]{1,0:T(1,128)}', space=vmem, size = 0x12000, scoped, tag = 'internal scratch']
  #allocation2 [shape = 'f32[2,18,25,4]{3,2,1,0:T(8,128)}', space=vmem, size = 0x90000, scoped, tag = 'scratch operand']
  %s0 = inlined_call_operand.vmem [shape: f32[2,16,16,4], index: 0, kind: input, shape index: {}]
  %s1 = inlined_call_operand.vmem [shape: f32[1,16,16,4], index: 1, kind: input, shape index: {}]
  %s2 = inlined_call_operand.vmem [shape: f32[1,1,1,4], index: 2, kind: input, shape index: {}]
  %s3 = inlined_call_operand.vmem [shape: f32[1,1,1,4], index: 3, kind: input, shape index: {}]
  %s4 = inlined_call_operand.vmem [shape: f32[2,16,16,4], index: 4, kind: output, shape index: {}]
  %s5 = sld [smem:[#allocation0]]
  $region26: #{tpu_custom_call.1} parent=0
    _
  %s7 = ssub.s32 1, %s5
  %s8 = scalar_select 0, %s7, %s5
  // Predicated region
  $region2: #{tpu_custom_call.1} parent=0 // pred_check
    _
  $region3: #{tpu_custom_call.1} parent=0 // pred_check_branch
    %10 = sbr.rel (0) target = $region5
  $region4: #{tpu_custom_call.1} parent=0 // pred_region
    _
  $region5: #{tpu_custom_call.1} parent=0 // pred_fallthru
    _
  // Predicated region
  $region6: #{tpu_custom_call.1} parent=0 // pred_check
    _
  $region7: #{tpu_custom_call.1} parent=0 // pred_check_branch
    %12 = sbr.rel (0) target = $region9
  $region8: #{tpu_custom_call.1} parent=0 // pred_region
    _
  $region9: #{tpu_custom_call.1} parent=0 // pred_fallthru
    _
  // Predicated region
  $region10: #{tpu_custom_call.1} parent=0 // pred_check
    _
  $region11: #{tpu_custom_call.1} parent=0 // pred_check_branch
    %14 = sbr.rel (0) target = $region13
  $region12: #{tpu_custom_call.1} parent=0 // pred_region
    _
  $region13: #{tpu_custom_call.1} parent=0 // pred_fallthru
    _
  // Predicated region
  $region14: #{tpu_custom_call.1} parent=0 // pred_check
    _
  $region15: #{tpu_custom_call.1} parent=0 // pred_check_branch
    %16 = sbr.rel (0) target = $region17
  $region16: #{tpu_custom_call.1} parent=0 // pred_region
    _
  $region17: #{tpu_custom_call.1} parent=0 // pred_fallthru
    _
  %vm17 = vcmask 31744
  %18 = vst.msk [vmem:[#allocation2] sm:$0xff] %vm17, 0.0
  %19 = vst.msk [vmem:[#allocation2 + $0x8] sm:$0xff] %vm17, 0.0
  %20 = vst.msk [vmem:[#allocation2 + $0x10] sm:$0xff] %vm17, 0.0
  %vm21 = vcmask 24576
  %22 = vst.msk [vmem:[#allocation2 + $0x18] sm:$0x1] %vm21, 0.0
  %23 = vst.msk [vmem:[#allocation2 + $0x20] sm:$0xff] %vm17, 0.0
  %24 = vst.msk [vmem:[#allocation2 + $0x28] sm:$0xff] %vm17, 0.0
  %25 = vst.msk [vmem:[#allocation2 + $0x30] sm:$0xff] %vm17, 0.0
  %26 = vst.msk [vmem:[#allocation2 + $0x38] sm:$0x1] %vm21, 0.0
  %27 = vst.msk [vmem:[#allocation2 + $0x40] sm:$0xff] %vm17, 0.0
  %28 = vst.msk [vmem:[#allocation2 + $0x48] sm:$0xff] %vm17, 0.0
  %29 = vst.msk [vmem:[#allocation2 + $0x50] sm:$0xff] %vm17, 0.0
  %30 = vst.msk [vmem:[#allocation2 + $0x58] sm:$0x1] %vm21, 0.0
  %31 = vst.msk [vmem:[#allocation2 + $0x60] sm:$0xff] %vm17, 0.0
  %32 = vst.msk [vmem:[#allocation2 + $0x68] sm:$0xff] %vm17, 0.0
  %33 = vst.msk [vmem:[#allocation2 + $0x70] sm:$0xff] %vm17, 0.0
  %34 = vst.msk [vmem:[#allocation2 + $0x78] sm:$0x1] %vm21, 0.0
  %35 = vst.msk [vmem:[#allocation2 + $0x80] sm:$0xff] %vm17, 0.0
  %36 = vst.msk [vmem:[#allocation2 + $0x88] sm:$0xff] %vm17, 0.0
  %37 = vst.msk [vmem:[#allocation2 + $0x90] sm:$0xff] %vm17, 0.0
  %38 = vst.msk [vmem:[#allocation2 + $0x98] sm:$0x1] %vm21, 0.0
  %39 = vst.msk [vmem:[#allocation2 + $0xa0] sm:$0xff] %vm17, 0.0
  %40 = vst.msk [vmem:[#allocation2 + $0xa8] sm:$0xff] %vm17, 0.0
  %41 = vst.msk [vmem:[#allocation2 + $0xb0] sm:$0xff] %vm17, 0.0
  %42 = vst.msk [vmem:[#allocation2 + $0xb8] sm:$0x1] %vm21, 0.0
  %43 = vst.msk [vmem:[#allocation2 + $0xc0] sm:$0xff] %vm17, 0.0
  %44 = vst.msk [vmem:[#allocation2 + $0xc8] sm:$0xff] %vm17, 0.0
  %45 = vst.msk [vmem:[#allocation2 + $0xd0] sm:$0xff] %vm17, 0.0
  %46 = vst.msk [vmem:[#allocation2 + $0xd8] sm:$0x1] %vm21, 0.0
  %47 = vst.msk [vmem:[#allocation2 + $0xe0] sm:$0xff] %vm17, 0.0
  %48 = vst.msk [vmem:[#allocation2 + $0xe8] sm:$0xff] %vm17, 0.0
  %49 = vst.msk [vmem:[#allocation2 + $0xf0] sm:$0xff] %vm17, 0.0
  %50 = vst.msk [vmem:[#allocation2 + $0xf8] sm:$0x1] %vm21, 0.0
  %51 = vst.msk [vmem:[#allocation2 + $0x100] sm:$0xff] %vm17, 0.0
  %52 = vst.msk [vmem:[#allocation2 + $0x108] sm:$0xff] %vm17, 0.0
  %53 = vst.msk [vmem:[#allocation2 + $0x110] sm:$0xff] %vm17, 0.0
  %54 = vst.msk [vmem:[#allocation2 + $0x118] sm:$0x1] %vm21, 0.0
  %55 = vst.msk [vmem:[#allocation2 + $0x120] sm:$0xff] %vm17, 0.0
  %56 = vst.msk [vmem:[#allocation2 + $0x128] sm:$0xff] %vm17, 0.0
  %57 = vst.msk [vmem:[#allocation2 + $0x130] sm:$0xff] %vm17, 0.0
  %58 = vst.msk [vmem:[#allocation2 + $0x138] sm:$0x1] %vm21, 0.0
  %59 = vst.msk [vmem:[#allocation2 + $0x140] sm:$0xff] %vm17, 0.0
  %60 = vst.msk [vmem:[#allocation2 + $0x148] sm:$0xff] %vm17, 0.0
  %61 = vst.msk [vmem:[#allocation2 + $0x150] sm:$0xff] %vm17, 0.0
  %62 = vst.msk [vmem:[#allocation2 + $0x158] sm:$0x1] %vm21, 0.0
  %63 = vst.msk [vmem:[#allocation2 + $0x160] sm:$0xff] %vm17, 0.0
  %64 = vst.msk [vmem:[#allocation2 + $0x168] sm:$0xff] %vm17, 0.0
  %65 = vst.msk [vmem:[#allocation2 + $0x170] sm:$0xff] %vm17, 0.0
  %66 = vst.msk [vmem:[#allocation2 + $0x178] sm:$0x1] %vm21, 0.0
  %67 = vst.msk [vmem:[#allocation2 + $0x180] sm:$0xff] %vm17, 0.0
  %68 = vst.msk [vmem:[#allocation2 + $0x188] sm:$0xff] %vm17, 0.0
  %69 = vst.msk [vmem:[#allocation2 + $0x190] sm:$0xff] %vm17, 0.0
  %70 = vst.msk [vmem:[#allocation2 + $0x198] sm:$0x1] %vm21, 0.0
  %71 = vst.msk [vmem:[#allocation2 + $0x1a0] sm:$0xff] %vm17, 0.0
  %72 = vst.msk [vmem:[#allocation2 + $0x1a8] sm:$0xff] %vm17, 0.0
  %73 = vst.msk [vmem:[#allocation2 + $0x1b0] sm:$0xff] %vm17, 0.0
  %74 = vst.msk [vmem:[#allocation2 + $0x1b8] sm:$0x1] %vm21, 0.0
  %75 = vst.msk [vmem:[#allocation2 + $0x1c0] sm:$0xff] %vm17, 0.0
  %76 = vst.msk [vmem:[#allocation2 + $0x1c8] sm:$0xff] %vm17, 0.0
  %77 = vst.msk [vmem:[#allocation2 + $0x1d0] sm:$0xff] %vm17, 0.0
  %78 = vst.msk [vmem:[#allocation2 + $0x1d8] sm:$0x1] %vm21, 0.0
  %79 = vst.msk [vmem:[#allocation2 + $0x1e0] sm:$0xff] %vm17, 0.0
  %80 = vst.msk [vmem:[#allocation2 + $0x1e8] sm:$0xff] %vm17, 0.0
  %81 = vst.msk [vmem:[#allocation2 + $0x1f0] sm:$0xff] %vm17, 0.0
  %82 = vst.msk [vmem:[#allocation2 + $0x1f8] sm:$0x1] %vm21, 0.0
  %83 = vst.msk [vmem:[#allocation2 + $0x200] sm:$0xff] %vm17, 0.0
  %84 = vst.msk [vmem:[#allocation2 + $0x208] sm:$0xff] %vm17, 0.0
  %85 = vst.msk [vmem:[#allocation2 + $0x210] sm:$0xff] %vm17, 0.0
  %86 = vst.msk [vmem:[#allocation2 + $0x218] sm:$0x1] %vm21, 0.0
  %87 = vst.msk [vmem:[#allocation2 + $0x220] sm:$0xff] %vm17, 0.0
  %88 = vst.msk [vmem:[#allocation2 + $0x228] sm:$0xff] %vm17, 0.0
  %89 = vst.msk [vmem:[#allocation2 + $0x230] sm:$0xff] %vm17, 0.0
  %90 = vst.msk [vmem:[#allocation2 + $0x238] sm:$0x1] %vm21, 0.0
  %91 = vst.msk [vmem:[#allocation2 + $0x240] sm:$0xff] %vm17, 0.0
  %92 = vst.msk [vmem:[#allocation2 + $0x248] sm:$0xff] %vm17, 0.0
  %93 = vst.msk [vmem:[#allocation2 + $0x250] sm:$0xff] %vm17, 0.0
  %94 = vst.msk [vmem:[#allocation2 + $0x258] sm:$0x1] %vm21, 0.0
  %95 = vst.msk [vmem:[#allocation2 + $0x260] sm:$0xff] %vm17, 0.0
  %96 = vst.msk [vmem:[#allocation2 + $0x268] sm:$0xff] %vm17, 0.0
  %97 = vst.msk [vmem:[#allocation2 + $0x270] sm:$0xff] %vm17, 0.0
  %98 = vst.msk [vmem:[#allocation2 + $0x278] sm:$0x1] %vm21, 0.0
  %99 = vst.msk [vmem:[#allocation2 + $0x280] sm:$0xff] %vm17, 0.0
  %100 = vst.msk [vmem:[#allocation2 + $0x288] sm:$0xff] %vm17, 0.0
  %101 = vst.msk [vmem:[#allocation2 + $0x290] sm:$0xff] %vm17, 0.0
  %102 = vst.msk [vmem:[#allocation2 + $0x298] sm:$0x1] %vm21, 0.0
  %103 = vst.msk [vmem:[#allocation2 + $0x2a0] sm:$0xff] %vm17, 0.0
  %104 = vst.msk [vmem:[#allocation2 + $0x2a8] sm:$0xff] %vm17, 0.0
  %105 = vst.msk [vmem:[#allocation2 + $0x2b0] sm:$0xff] %vm17, 0.0
  %106 = vst.msk [vmem:[#allocation2 + $0x2b8] sm:$0x1] %vm21, 0.0
  %107 = vst.msk [vmem:[#allocation2 + $0x2c0] sm:$0xff] %vm17, 0.0
  %108 = vst.msk [vmem:[#allocation2 + $0x2c8] sm:$0xff] %vm17, 0.0
  %109 = vst.msk [vmem:[#allocation2 + $0x2d0] sm:$0xff] %vm17, 0.0
  %110 = vst.msk [vmem:[#allocation2 + $0x2d8] sm:$0x1] %vm21, 0.0
  %111 = vst.msk [vmem:[#allocation2 + $0x2e0] sm:$0xff] %vm17, 0.0
  %112 = vst.msk [vmem:[#allocation2 + $0x2e8] sm:$0xff] %vm17, 0.0
  %113 = vst.msk [vmem:[#allocation2 + $0x2f0] sm:$0xff] %vm17, 0.0
  %114 = vst.msk [vmem:[#allocation2 + $0x2f8] sm:$0x1] %vm21, 0.0
  %115 = vst.msk [vmem:[#allocation2 + $0x300] sm:$0xff] %vm17, 0.0
  %116 = vst.msk [vmem:[#allocation2 + $0x308] sm:$0xff] %vm17, 0.0
  %117 = vst.msk [vmem:[#allocation2 + $0x310] sm:$0xff] %vm17, 0.0
  %118 = vst.msk [vmem:[#allocation2 + $0x318] sm:$0x1] %vm21, 0.0
  %119 = vst.msk [vmem:[#allocation2 + $0x320] sm:$0xff] %vm17, 0.0
  %120 = vst.msk [vmem:[#allocation2 + $0x328] sm:$0xff] %vm17, 0.0
  %121 = vst.msk [vmem:[#allocation2 + $0x330] sm:$0xff] %vm17, 0.0
  %122 = vst.msk [vmem:[#allocation2 + $0x338] sm:$0x1] %vm21, 0.0
  %123 = vst.msk [vmem:[#allocation2 + $0x340] sm:$0xff] %vm17, 0.0
  %124 = vst.msk [vmem:[#allocation2 + $0x348] sm:$0xff] %vm17, 0.0
  %125 = vst.msk [vmem:[#allocation2 + $0x350] sm:$0xff] %vm17, 0.0
  %126 = vst.msk [vmem:[#allocation2 + $0x358] sm:$0x1] %vm21, 0.0
  %127 = vst.msk [vmem:[#allocation2 + $0x360] sm:$0xff] %vm17, 0.0
  %128 = vst.msk [vmem:[#allocation2 + $0x368] sm:$0xff] %vm17, 0.0
  %129 = vst.msk [vmem:[#allocation2 + $0x370] sm:$0xff] %vm17, 0.0
  %130 = vst.msk [vmem:[#allocation2 + $0x378] sm:$0x1] %vm21, 0.0
  %131 = vst.msk [vmem:[#allocation2 + $0x380] sm:$0xff] %vm17, 0.0
  %132 = vst.msk [vmem:[#allocation2 + $0x388] sm:$0xff] %vm17, 0.0
  %133 = vst.msk [vmem:[#allocation2 + $0x390] sm:$0xff] %vm17, 0.0
  %134 = vst.msk [vmem:[#allocation2 + $0x398] sm:$0x1] %vm21, 0.0
  %135 = vst.msk [vmem:[#allocation2 + $0x3a0] sm:$0xff] %vm17, 0.0
  %136 = vst.msk [vmem:[#allocation2 + $0x3a8] sm:$0xff] %vm17, 0.0
  %137 = vst.msk [vmem:[#allocation2 + $0x3b0] sm:$0xff] %vm17, 0.0
  %138 = vst.msk [vmem:[#allocation2 + $0x3b8] sm:$0x1] %vm21, 0.0
  %139 = vst.msk [vmem:[#allocation2 + $0x3c0] sm:$0xff] %vm17, 0.0
  %140 = vst.msk [vmem:[#allocation2 + $0x3c8] sm:$0xff] %vm17, 0.0
  %141 = vst.msk [vmem:[#allocation2 + $0x3d0] sm:$0xff] %vm17, 0.0
  %142 = vst.msk [vmem:[#allocation2 + $0x3d8] sm:$0x1] %vm21, 0.0
  %143 = vst.msk [vmem:[#allocation2 + $0x3e0] sm:$0xff] %vm17, 0.0
  %144 = vst.msk [vmem:[#allocation2 + $0x3e8] sm:$0xff] %vm17, 0.0
  %145 = vst.msk [vmem:[#allocation2 + $0x3f0] sm:$0xff] %vm17, 0.0
  %146 = vst.msk [vmem:[#allocation2 + $0x3f8] sm:$0x1] %vm21, 0.0
  %147 = vst.msk [vmem:[#allocation2 + $0x400] sm:$0xff] %vm17, 0.0
  %148 = vst.msk [vmem:[#allocation2 + $0x408] sm:$0xff] %vm17, 0.0
  %149 = vst.msk [vmem:[#allocation2 + $0x410] sm:$0xff] %vm17, 0.0
  %150 = vst.msk [vmem:[#allocation2 + $0x418] sm:$0x1] %vm21, 0.0
  %151 = vst.msk [vmem:[#allocation2 + $0x420] sm:$0xff] %vm17, 0.0
  %152 = vst.msk [vmem:[#allocation2 + $0x428] sm:$0xff] %vm17, 0.0
  %153 = vst.msk [vmem:[#allocation2 + $0x430] sm:$0xff] %vm17, 0.0
  %154 = vst.msk [vmem:[#allocation2 + $0x438] sm:$0x1] %vm21, 0.0
  %155 = vst.msk [vmem:[#allocation2 + $0x440] sm:$0xff] %vm17, 0.0
  %156 = vst.msk [vmem:[#allocation2 + $0x448] sm:$0xff] %vm17, 0.0
  %157 = vst.msk [vmem:[#allocation2 + $0x450] sm:$0xff] %vm17, 0.0
  %158 = vst.msk [vmem:[#allocation2 + $0x458] sm:$0x1] %vm21, 0.0
  %159 = vst.msk [vmem:[#allocation2 + $0x460] sm:$0xff] %vm17, 0.0
  %160 = vst.msk [vmem:[#allocation2 + $0x468] sm:$0xff] %vm17, 0.0
  %161 = vst.msk [vmem:[#allocation2 + $0x470] sm:$0xff] %vm17, 0.0
  %162 = vst.msk [vmem:[#allocation2 + $0x478] sm:$0x1] %vm21, 0.0
  %v163 = vld [vmem:[%s0] sm:$0xff]
  %v164 = vld [vmem:[%s0 + $0x8] sm:$0xff]
  %v165 = vld [vmem:[%s0 + $0x10] sm:$0xff]
  %v166 = vld [vmem:[%s0 + $0x18] sm:$0xff]
  %v167 = vld [vmem:[%s0 + $0x20] sm:$0xff]
  %v168 = vld [vmem:[%s0 + $0x28] sm:$0xff]
  %v169 = vld [vmem:[%s0 + $0x30] sm:$0xff]
  %v170 = vld [vmem:[%s0 + $0x38] sm:$0xff]
  %v171 = vld [vmem:[%s0 + $0x40] sm:$0xff]
  %v172 = vld [vmem:[%s0 + $0x48] sm:$0xff]
  %v173 = vld [vmem:[%s0 + $0x50] sm:$0xff]
  %v174 = vld [vmem:[%s0 + $0x58] sm:$0xff]
  %v175 = vld [vmem:[%s0 + $0x60] sm:$0xff]
  %v176 = vld [vmem:[%s0 + $0x68] sm:$0xff]
  %v177 = vld [vmem:[%s0 + $0x70] sm:$0xff]
  %v178 = vld [vmem:[%s0 + $0x78] sm:$0xff]
  %v179 = vld [vmem:[%s0 + $0x80] sm:$0xff]
  %v180 = vld [vmem:[%s0 + $0x88] sm:$0xff]
  %v181 = vld [vmem:[%s0 + $0x90] sm:$0xff]
  %v182 = vld [vmem:[%s0 + $0x98] sm:$0xff]
  %v183 = vld [vmem:[%s0 + $0xa0] sm:$0xff]
  %v184 = vld [vmem:[%s0 + $0xa8] sm:$0xff]
  %v185 = vld [vmem:[%s0 + $0xb0] sm:$0xff]
  %v186 = vld [vmem:[%s0 + $0xb8] sm:$0xff]
  %v187 = vld [vmem:[%s0 + $0xc0] sm:$0xff]
  %v188 = vld [vmem:[%s0 + $0xc8] sm:$0xff]
  %v189 = vld [vmem:[%s0 + $0xd0] sm:$0xff]
  %v190 = vld [vmem:[%s0 + $0xd8] sm:$0xff]
  %v191 = vld [vmem:[%s0 + $0xe0] sm:$0xff]
  %v192 = vld [vmem:[%s0 + $0xe8] sm:$0xff]
  %v193 = vld [vmem:[%s0 + $0xf0] sm:$0xff]
  %v194 = vld [vmem:[%s0 + $0xf8] sm:$0xff]
  %v195 = vld [vmem:[%s0 + $0x100] sm:$0xff]
  %v196 = vld [vmem:[%s0 + $0x108] sm:$0xff]
  %v197 = vld [vmem:[%s0 + $0x110] sm:$0xff]
  %v198 = vld [vmem:[%s0 + $0x118] sm:$0xff]
  %v199 = vld [vmem:[%s0 + $0x120] sm:$0xff]
  %v200 = vld [vmem:[%s0 + $0x128] sm:$0xff]
  %v201 = vld [vmem:[%s0 + $0x130] sm:$0xff]
  %v202 = vld [vmem:[%s0 + $0x138] sm:$0xff]
  %v203 = vld [vmem:[%s0 + $0x140] sm:$0xff]
  %v204 = vld [vmem:[%s0 + $0x148] sm:$0xff]
  %v205 = vld [vmem:[%s0 + $0x150] sm:$0xff]
  %v206 = vld [vmem:[%s0 + $0x158] sm:$0xff]
  %v207 = vld [vmem:[%s0 + $0x160] sm:$0xff]
  %v208 = vld [vmem:[%s0 + $0x168] sm:$0xff]
  %v209 = vld [vmem:[%s0 + $0x170] sm:$0xff]
  %v210 = vld [vmem:[%s0 + $0x178] sm:$0xff]
  %v211 = vld [vmem:[%s0 + $0x180] sm:$0xff]
  %v212 = vld [vmem:[%s0 + $0x188] sm:$0xff]
  %v213 = vld [vmem:[%s0 + $0x190] sm:$0xff]
  %v214 = vld [vmem:[%s0 + $0x198] sm:$0xff]
  %v215 = vld [vmem:[%s0 + $0x1a0] sm:$0xff]
  %v216 = vld [vmem:[%s0 + $0x1a8] sm:$0xff]
  %v217 = vld [vmem:[%s0 + $0x1b0] sm:$0xff]
  %v218 = vld [vmem:[%s0 + $0x1b8] sm:$0xff]
  %v219 = vld [vmem:[%s0 + $0x1c0] sm:$0xff]
  %v220 = vld [vmem:[%s0 + $0x1c8] sm:$0xff]
  %v221 = vld [vmem:[%s0 + $0x1d0] sm:$0xff]
  %v222 = vld [vmem:[%s0 + $0x1d8] sm:$0xff]
  %v223 = vld [vmem:[%s0 + $0x1e0] sm:$0xff]
  %v224 = vld [vmem:[%s0 + $0x1e8] sm:$0xff]
  %v225 = vld [vmem:[%s0 + $0x1f0] sm:$0xff]
  %v226 = vld [vmem:[%s0 + $0x1f8] sm:$0xff]
  %s227 = scalar_lea.vmem [#allocation2], 32
  %228 = vst.msk [vmem:[%s227 + $0x8] sm:$0xff] %vm17, %v163
  %229 = vst.msk [vmem:[%s227 + $0x10] sm:$0xff] %vm17, %v164
  %230 = vst.msk [vmem:[%s227 + $0x28] sm:$0xff] %vm17, %v165
  %231 = vst.msk [vmem:[%s227 + $0x30] sm:$0xff] %vm17, %v166
  %232 = vst.msk [vmem:[%s227 + $0x48] sm:$0xff] %vm17, %v167
  %233 = vst.msk [vmem:[%s227 + $0x50] sm:$0xff] %vm17, %v168
  %234 = vst.msk [vmem:[%s227 + $0x68] sm:$0xff] %vm17, %v169
  %235 = vst.msk [vmem:[%s227 + $0x70] sm:$0xff] %vm17, %v170
  %236 = vst.msk [vmem:[%s227 + $0x88] sm:$0xff] %vm17, %v171
  %237 = vst.msk [vmem:[%s227 + $0x90] sm:$0xff] %vm17, %v172
  %238 = vst.msk [vmem:[%s227 + $0xa8] sm:$0xff] %vm17, %v173
  %239 = vst.msk [vmem:[%s227 + $0xb0] sm:$0xff] %vm17, %v174
  %240 = vst.msk [vmem:[%s227 + $0xc8] sm:$0xff] %vm17, %v175
  %241 = vst.msk [vmem:[%s227 + $0xd0] sm:$0xff] %vm17, %v176
  %242 = vst.msk [vmem:[%s227 + $0xe8] sm:$0xff] %vm17, %v177
  %243 = vst.msk [vmem:[%s227 + $0xf0] sm:$0xff] %vm17, %v178
  %244 = vst.msk [vmem:[%s227 + $0x108] sm:$0xff] %vm17, %v179
  %245 = vst.msk [vmem:[%s227 + $0x110] sm:$0xff] %vm17, %v180
  %246 = vst.msk [vmem:[%s227 + $0x128] sm:$0xff] %vm17, %v181
  %247 = vst.msk [vmem:[%s227 + $0x130] sm:$0xff] %vm17, %v182
  %248 = vst.msk [vmem:[%s227 + $0x148] sm:$0xff] %vm17, %v183
  %249 = vst.msk [vmem:[%s227 + $0x150] sm:$0xff] %vm17, %v184
  %250 = vst.msk [vmem:[%s227 + $0x168] sm:$0xff] %vm17, %v185
  %251 = vst.msk [vmem:[%s227 + $0x170] sm:$0xff] %vm17, %v186
  %252 = vst.msk [vmem:[%s227 + $0x188] sm:$0xff] %vm17, %v187
  %253 = vst.msk [vmem:[%s227 + $0x190] sm:$0xff] %vm17, %v188
  %254 = vst.msk [vmem:[%s227 + $0x1a8] sm:$0xff] %vm17, %v189
  %255 = vst.msk [vmem:[%s227 + $0x1b0] sm:$0xff] %vm17, %v190
  %256 = vst.msk [vmem:[%s227 + $0x1c8] sm:$0xff] %vm17, %v191
  %257 = vst.msk [vmem:[%s227 + $0x1d0] sm:$0xff] %vm17, %v192
  %258 = vst.msk [vmem:[%s227 + $0x1e8] sm:$0xff] %vm17, %v193
  %259 = vst.msk [vmem:[%s227 + $0x1f0] sm:$0xff] %vm17, %v194
  %260 = vst.msk [vmem:[%s227 + $0x248] sm:$0xff] %vm17, %v195
  %261 = vst.msk [vmem:[%s227 + $0x250] sm:$0xff] %vm17, %v196
  %262 = vst.msk [vmem:[%s227 + $0x268] sm:$0xff] %vm17, %v197
  %263 = vst.msk [vmem:[%s227 + $0x270] sm:$0xff] %vm17, %v198
  %264 = vst.msk [vmem:[%s227 + $0x288] sm:$0xff] %vm17, %v199
  %265 = vst.msk [vmem:[%s227 + $0x290] sm:$0xff] %vm17, %v200
  %266 = vst.msk [vmem:[%s227 + $0x2a8] sm:$0xff] %vm17, %v201
  %267 = vst.msk [vmem:[%s227 + $0x2b0] sm:$0xff] %vm17, %v202
  %268 = vst.msk [vmem:[%s227 + $0x2c8] sm:$0xff] %vm17, %v203
  %269 = vst.msk [vmem:[%s227 + $0x2d0] sm:$0xff] %vm17, %v204
  %270 = vst.msk [vmem:[%s227 + $0x2e8] sm:$0xff] %vm17, %v205
  %271 = vst.msk [vmem:[%s227 + $0x2f0] sm:$0xff] %vm17, %v206
  %272 = vst.msk [vmem:[%s227 + $0x308] sm:$0xff] %vm17, %v207
  %273 = vst.msk [vmem:[%s227 + $0x310] sm:$0xff] %vm17, %v208
  %274 = vst.msk [vmem:[%s227 + $0x328] sm:$0xff] %vm17, %v209
  %275 = vst.msk [vmem:[%s227 + $0x330] sm:$0xff] %vm17, %v210
  %276 = vst.msk [vmem:[%s227 + $0x348] sm:$0xff] %vm17, %v211
  %277 = vst.msk [vmem:[%s227 + $0x350] sm:$0xff] %vm17, %v212
  %278 = vst.msk [vmem:[%s227 + $0x368] sm:$0xff] %vm17, %v213
  %279 = vst.msk [vmem:[%s227 + $0x370] sm:$0xff] %vm17, %v214
  %280 = vst.msk [vmem:[%s227 + $0x388] sm:$0xff] %vm17, %v215
  %281 = vst.msk [vmem:[%s227 + $0x390] sm:$0xff] %vm17, %v216
  %282 = vst.msk [vmem:[%s227 + $0x3a8] sm:$0xff] %vm17, %v217
  %283 = vst.msk [vmem:[%s227 + $0x3b0] sm:$0xff] %vm17, %v218
  %284 = vst.msk [vmem:[%s227 + $0x3c8] sm:$0xff] %vm17, %v219
  %285 = vst.msk [vmem:[%s227 + $0x3d0] sm:$0xff] %vm17, %v220
  %286 = vst.msk [vmem:[%s227 + $0x3e8] sm:$0xff] %vm17, %v221
  %287 = vst.msk [vmem:[%s227 + $0x3f0] sm:$0xff] %vm17, %v222
  %288 = vst.msk [vmem:[%s227 + $0x408] sm:$0xff] %vm17, %v223
  %289 = vst.msk [vmem:[%s227 + $0x410] sm:$0xff] %vm17, %v224
  %290 = vst.msk [vmem:[%s227 + $0x428] sm:$0xff] %vm17, %v225
  %291 = vst.msk [vmem:[%s227 + $0x430] sm:$0xff] %vm17, %v226
  %v292 = vld [vmem:[#allocation2] sm:$0xff]
  %v293 = vld [vmem:[#allocation2 + $0x8] sm:$0xff]
  %v294 = vld [vmem:[#allocation2 + $0x10] sm:$0xff]
  %v295 = vld [vmem:[#allocation2 + $0x18] sm:$0x1]
  %v296 = vld [vmem:[#allocation2 + $0x20] sm:$0xff]
  %v297 = vld [vmem:[#allocation2 + $0x28] sm:$0xff]
  %v298 = vld [vmem:[#allocation2 + $0x30] sm:$0xff]
  %v299 = vld [vmem:[#allocation2 + $0x38] sm:$0x1]
  %v300 = vld [vmem:[#allocation2 + $0x40] sm:$0xff]
  %v301 = vld [vmem:[#allocation2 + $0x48] sm:$0xff]
  %v302 = vld [vmem:[#allocation2 + $0x50] sm:$0xff]
  %v303 = vld [vmem:[#allocation2 + $0x58] sm:$0x1]
  %v304 = vld [vmem:[#allocation2 + $0x60] sm:$0xff]
  %v305 = vld [vmem:[#allocation2 + $0x68] sm:$0xff]
  %v306 = vld [vmem:[#allocation2 + $0x70] sm:$0xff]
  %v307 = vld [vmem:[#allocation2 + $0x78] sm:$0x1]
  %v308 = vld [vmem:[#allocation2 + $0x80] sm:$0xff]
  %v309 = vld [vmem:[#allocation2 + $0x88] sm:$0xff]
  %v310 = vld [vmem:[#allocation2 + $0x90] sm:$0xff]
  %v311 = vld [vmem:[#allocation2 + $0x98] sm:$0x1]
  %v312 = vld [vmem:[#allocation2 + $0xa0] sm:$0xff]
  %v313 = vld [vmem:[#allocation2 + $0xa8] sm:$0xff]
  %v314 = vld [vmem:[#allocation2 + $0xb0] sm:$0xff]
  %v315 = vld [vmem:[#allocation2 + $0xb8] sm:$0x1]
  %v316 = vld [vmem:[#allocation2 + $0xc0] sm:$0xff]
  %v317 = vld [vmem:[#allocation2 + $0xc8] sm:$0xff]
  %v318 = vld [vmem:[#allocation2 + $0xd0] sm:$0xff]
  %v319 = vld [vmem:[#allocation2 + $0xd8] sm:$0x1]
  %v320 = vld [vmem:[#allocation2 + $0xe0] sm:$0xff]
  %v321 = vld [vmem:[#allocation2 + $0xe8] sm:$0xff]
  %v322 = vld [vmem:[#allocation2 + $0xf0] sm:$0xff]
  %v323 = vld [vmem:[#allocation2 + $0xf8] sm:$0x1]
  %v324 = vld [vmem:[#allocation2 + $0x100] sm:$0xff]
  %v325 = vld [vmem:[#allocation2 + $0x108] sm:$0xff]
  %v326 = vld [vmem:[#allocation2 + $0x110] sm:$0xff]
  %v327 = vld [vmem:[#allocation2 + $0x118] sm:$0x1]
  %v328 = vld [vmem:[#allocation2 + $0x120] sm:$0xff]
  %v329 = vld [vmem:[#allocation2 + $0x128] sm:$0xff]
  %v330 = vld [vmem:[#allocation2 + $0x130] sm:$0xff]
  %v331 = vld [vmem:[#allocation2 + $0x138] sm:$0x1]
  %v332 = vld [vmem:[#allocation2 + $0x140] sm:$0xff]
  %v333 = vld [vmem:[#allocation2 + $0x148] sm:$0xff]
  %v334 = vld [vmem:[#allocation2 + $0x150] sm:$0xff]
  %v335 = vld [vmem:[#allocation2 + $0x158] sm:$0x1]
  %v336 = vld [vmem:[#allocation2 + $0x160] sm:$0xff]
  %v337 = vld [vmem:[#allocation2 + $0x168] sm:$0xff]
  %v338 = vld [vmem:[#allocation2 + $0x170] sm:$0xff]
  %v339 = vld [vmem:[#allocation2 + $0x178] sm:$0x1]
  %v340 = vld [vmem:[#allocation2 + $0x180] sm:$0xff]
  %v341 = vld [vmem:[#allocation2 + $0x188] sm:$0xff]
  %v342 = vld [vmem:[#allocation2 + $0x190] sm:$0xff]
  %v343 = vld [vmem:[#allocation2 + $0x198] sm:$0x1]
  %v344 = vld [vmem:[#allocation2 + $0x1a0] sm:$0xff]
  %v345 = vld [vmem:[#allocation2 + $0x1a8] sm:$0xff]
  %v346 = vld [vmem:[#allocation2 + $0x1b0] sm:$0xff]
  %v347 = vld [vmem:[#allocation2 + $0x1b8] sm:$0x1]
  %v348 = vld [vmem:[#allocation2 + $0x1c0] sm:$0xff]
  %v349 = vld [vmem:[#allocation2 + $0x1c8] sm:$0xff]
  %v350 = vld [vmem:[#allocation2 + $0x1d0] sm:$0xff]
  %v351 = vld [vmem:[#allocation2 + $0x1d8] sm:$0x1]
  %v352 = vld [vmem:[#allocation2 + $0x1e0] sm:$0xff]
  %v353 = vld [vmem:[#allocation2 + $0x1e8] sm:$0xff]
  %v354 = vld [vmem:[#allocation2 + $0x1f0] sm:$0xff]
  %v355 = vld [vmem:[#allocation2 + $0x1f8] sm:$0x1]
  %v356 = vld [vmem:[#allocation2 + $0x200] sm:$0xff]
  %v357 = vld [vmem:[#allocation2 + $0x208] sm:$0xff]
  %v358 = vld [vmem:[#allocation2 + $0x210] sm:$0xff]
  %v359 = vld [vmem:[#allocation2 + $0x218] sm:$0x1]
  %v360 = vld [vmem:[#allocation2 + $0x220] sm:$0xff]
  %v361 = vld [vmem:[#allocation2 + $0x228] sm:$0xff]
  %v362 = vld [vmem:[#allocation2 + $0x230] sm:$0xff]
  %v363 = vld [vmem:[#allocation2 + $0x238] sm:$0x1]
  %v364 = vld [vmem:[#allocation2 + $0x240] sm:$0xff]
  %v365 = vld [vmem:[#allocation2 + $0x248] sm:$0xff]
  %v366 = vld [vmem:[#allocation2 + $0x250] sm:$0xff]
  %v367 = vld [vmem:[#allocation2 + $0x258] sm:$0x1]
  %v368 = vld [vmem:[#allocation2 + $0x260] sm:$0xff]
  %v369 = vld [vmem:[#allocation2 + $0x268] sm:$0xff]
  %v370 = vld [vmem:[#allocation2 + $0x270] sm:$0xff]
  %v371 = vld [vmem:[#allocation2 + $0x278] sm:$0x1]
  %v372 = vld [vmem:[#allocation2 + $0x280] sm:$0xff]
  %v373 = vld [vmem:[#allocation2 + $0x288] sm:$0xff]
  %v374 = vld [vmem:[#allocation2 + $0x290] sm:$0xff]
  %v375 = vld [vmem:[#allocation2 + $0x298] sm:$0x1]
  %v376 = vld [vmem:[#allocation2 + $0x2a0] sm:$0xff]
  %v377 = vld [vmem:[#allocation2 + $0x2a8] sm:$0xff]
  %v378 = vld [vmem:[#allocation2 + $0x2b0] sm:$0xff]
  %v379 = vld [vmem:[#allocation2 + $0x2b8] sm:$0x1]
  %v380 = vld [vmem:[#allocation2 + $0x2c0] sm:$0xff]
  %v381 = vld [vmem:[#allocation2 + $0x2c8] sm:$0xff]
  %v382 = vld [vmem:[#allocation2 + $0x2d0] sm:$0xff]
  %v383 = vld [vmem:[#allocation2 + $0x2d8] sm:$0x1]
  %v384 = vld [vmem:[#allocation2 + $0x2e0] sm:$0xff]
  %v385 = vld [vmem:[#allocation2 + $0x2e8] sm:$0xff]
  %v386 = vld [vmem:[#allocation2 + $0x2f0] sm:$0xff]
  %v387 = vld [vmem:[#allocation2 + $0x2f8] sm:$0x1]
  %v388 = vld [vmem:[#allocation2 + $0x300] sm:$0xff]
  %v389 = vld [vmem:[#allocation2 + $0x308] sm:$0xff]
  %v390 = vld [vmem:[#allocation2 + $0x310] sm:$0xff]
  %v391 = vld [vmem:[#allocation2 + $0x318] sm:$0x1]
  %v392 = vld [vmem:[#allocation2 + $0x320] sm:$0xff]
  %v393 = vld [vmem:[#allocation2 + $0x328] sm:$0xff]
  %v394 = vld [vmem:[#allocation2 + $0x330] sm:$0xff]
  %v395 = vld [vmem:[#allocation2 + $0x338] sm:$0x1]
  %v396 = vld [vmem:[#allocation2 + $0x340] sm:$0xff]
  %v397 = vld [vmem:[#allocation2 + $0x348] sm:$0xff]
  %v398 = vld [vmem:[#allocation2 + $0x350] sm:$0xff]
  %v399 = vld [vmem:[#allocation2 + $0x358] sm:$0x1]
  %v400 = vld [vmem:[#allocation2 + $0x360] sm:$0xff]
  %v401 = vld [vmem:[#allocation2 + $0x368] sm:$0xff]
  %v402 = vld [vmem:[#allocation2 + $0x370] sm:$0xff]
  %v403 = vld [vmem:[#allocation2 + $0x378] sm:$0x1]
  %v404 = vld [vmem:[#allocation2 + $0x380] sm:$0xff]
  %v405 = vld [vmem:[#allocation2 + $0x388] sm:$0xff]
  %v406 = vld [vmem:[#allocation2 + $0x390] sm:$0xff]
  %v407 = vld [vmem:[#allocation2 + $0x398] sm:$0x1]
  %v408 = vld [vmem:[#allocation2 + $0x3a0] sm:$0xff]
  %v409 = vld [vmem:[#allocation2 + $0x3a8] sm:$0xff]
  %v410 = vld [vmem:[#allocation2 + $0x3b0] sm:$0xff]
  %v411 = vld [vmem:[#allocation2 + $0x3b8] sm:$0x1]
  %v412 = vld [vmem:[#allocation2 + $0x3c0] sm:$0xff]
  %v413 = vld [vmem:[#allocation2 + $0x3c8] sm:$0xff]
  %v414 = vld [vmem:[#allocation2 + $0x3d0] sm:$0xff]
  %v415 = vld [vmem:[#allocation2 + $0x3d8] sm:$0x1]
  %v416 = vld [vmem:[#allocation2 + $0x3e0] sm:$0xff]
  %v417 = vld [vmem:[#allocation2 + $0x3e8] sm:$0xff]
  %v418 = vld [vmem:[#allocation2 + $0x3f0] sm:$0xff]
  %v419 = vld [vmem:[#allocation2 + $0x3f8] sm:$0x1]
  %v420 = vld [vmem:[#allocation2 + $0x400] sm:$0xff]
  %v421 = vld [vmem:[#allocation2 + $0x408] sm:$0xff]
  %v422 = vld [vmem:[#allocation2 + $0x410] sm:$0xff]
  %v423 = vld [vmem:[#allocation2 + $0x418] sm:$0x1]
  %v424 = vld [vmem:[#allocation2 + $0x420] sm:$0xff]
  %v425 = vld [vmem:[#allocation2 + $0x428] sm:$0xff]
  %v426 = vld [vmem:[#allocation2 + $0x430] sm:$0xff]
  %v427 = vld [vmem:[#allocation2 + $0x438] sm:$0x1]
  %v428 = vld [vmem:[#allocation2 + $0x440] sm:$0xff]
  %v429 = vld [vmem:[#allocation2 + $0x448] sm:$0xff]
  %v430 = vld [vmem:[#allocation2 + $0x450] sm:$0xff]
  %v431 = vld [vmem:[#allocation2 + $0x458] sm:$0x1]
  %v432 = vld [vmem:[#allocation2 + $0x460] sm:$0xff]
  %v433 = vld [vmem:[#allocation2 + $0x468] sm:$0xff]
  %v434 = vld [vmem:[#allocation2 + $0x470] sm:$0xff]
  %v435 = vld [vmem:[#allocation2 + $0x478] sm:$0x1]
  %vm508 = vcmask 1046528
  %v509 = vrot.slane %v293, 1
  %v510 = vrot.slane %v294, 1
  %v511 = vsel %vm508, %v509, %v510
  %v512 = vrot.slane %v297, 1
  %v513 = vrot.slane %v298, 1
  %v514 = vsel %vm508, %v512, %v513
  %v515 = vrot.slane %v301, 1
  %v516 = vrot.slane %v302, 1
  %v517 = vsel %vm508, %v515, %v516
  %v518 = vrot.slane %v305, 1
  %v519 = vrot.slane %v306, 1
  %v520 = vsel %vm508, %v518, %v519
  %v521 = vrot.slane %v309, 1
  %v522 = vrot.slane %v310, 1
  %v523 = vsel %vm508, %v521, %v522
  %v524 = vrot.slane %v313, 1
  %v525 = vrot.slane %v314, 1
  %v526 = vsel %vm508, %v524, %v525
  %v527 = vrot.slane %v317, 1
  %v528 = vrot.slane %v318, 1
  %v529 = vsel %vm508, %v527, %v528
  %v530 = vrot.slane %v321, 1
  %v531 = vrot.slane %v322, 1
  %v532 = vsel %vm508, %v530, %v531
  %v533 = vrot.slane %v325, 1
  %v534 = vrot.slane %v326, 1
  %v535 = vsel %vm508, %v533, %v534
  %v536 = vrot.slane %v329, 1
  %v537 = vrot.slane %v330, 1
  %v538 = vsel %vm508, %v536, %v537
  %v539 = vrot.slane %v333, 1
  %v540 = vrot.slane %v334, 1
  %v541 = vsel %vm508, %v539, %v540
  %v542 = vrot.slane %v337, 1
  %v543 = vrot.slane %v338, 1
  %v544 = vsel %vm508, %v542, %v543
  %v545 = vrot.slane %v341, 1
  %v546 = vrot.slane %v342, 1
  %v547 = vsel %vm508, %v545, %v546
  %v548 = vrot.slane %v345, 1
  %v549 = vrot.slane %v346, 1
  %v550 = vsel %vm508, %v548, %v549
  %v551 = vrot.slane %v349, 1
  %v552 = vrot.slane %v350, 1
  %v553 = vsel %vm508, %v551, %v552
  %v554 = vrot.slane %v353, 1
  %v555 = vrot.slane %v354, 1
  %v556 = vsel %vm508, %v554, %v555
  %v557 = vrot.slane %v357, 1
  %v558 = vrot.slane %v358, 1
  %v559 = vsel %vm508, %v557, %v558
  %v560 = vrot.slane %v361, 1
  %v561 = vrot.slane %v362, 1
  %v562 = vsel %vm508, %v560, %v561
  %v563 = vrot.slane %v365, 1
  %v564 = vrot.slane %v366, 1
  %v565 = vsel %vm508, %v563, %v564
  %v566 = vrot.slane %v369, 1
  %v567 = vrot.slane %v370, 1
  %v568 = vsel %vm508, %v566, %v567
  %v569 = vrot.slane %v373, 1
  %v570 = vrot.slane %v374, 1
  %v571 = vsel %vm508, %v569, %v570
  %v572 = vrot.slane %v377, 1
  %v573 = vrot.slane %v378, 1
  %v574 = vsel %vm508, %v572, %v573
  %v575 = vrot.slane %v381, 1
  %v576 = vrot.slane %v382, 1
  %v577 = vsel %vm508, %v575, %v576
  %v578 = vrot.slane %v385, 1
  %v579 = vrot.slane %v386, 1
  %v580 = vsel %vm508, %v578, %v579
  %v581 = vrot.slane %v389, 1
  %v582 = vrot.slane %v390, 1
  %v583 = vsel %vm508, %v581, %v582
  %v584 = vrot.slane %v393, 1
  %v585 = vrot.slane %v394, 1
  %v586 = vsel %vm508, %v584, %v585
  %v587 = vrot.slane %v397, 1
  %v588 = vrot.slane %v398, 1
  %v589 = vsel %vm508, %v587, %v588
  %v590 = vrot.slane %v401, 1
  %v591 = vrot.slane %v402, 1
  %v592 = vsel %vm508, %v590, %v591
  %v593 = vrot.slane %v405, 1
  %v594 = vrot.slane %v406, 1
  %v595 = vsel %vm508, %v593, %v594
  %v596 = vrot.slane %v409, 1
  %v597 = vrot.slane %v410, 1
  %v598 = vsel %vm508, %v596, %v597
  %v599 = vrot.slane %v413, 1
  %v600 = vrot.slane %v414, 1
  %v601 = vsel %vm508, %v599, %v600
  %v602 = vrot.slane %v417, 1
  %v603 = vrot.slane %v418, 1
  %v604 = vsel %vm508, %v602, %v603
  %v605 = vrot.slane %v421, 1
  %v606 = vrot.slane %v422, 1
  %v607 = vsel %vm508, %v605, %v606
  %v608 = vrot.slane %v425, 1
  %v609 = vrot.slane %v426, 1
  %v610 = vsel %vm508, %v608, %v609
  %v611 = vrot.slane %v429, 1
  %v612 = vrot.slane %v430, 1
  %v613 = vsel %vm508, %v611, %v612
  %v614 = vrot.slane %v433, 1
  %v615 = vrot.slane %v434, 1
  %v616 = vsel %vm508, %v614, %v615
  %v725 = vadd.f32 %v292, %v509
  %v726 = vadd.f32 %v293, %v511
  %v727 = vadd.f32 %v294, %v510
  %v728 = vadd.f32 %v296, %v512
  %v729 = vadd.f32 %v297, %v514
  %v730 = vadd.f32 %v298, %v513
  %v731 = vadd.f32 %v300, %v515
  %v732 = vadd.f32 %v301, %v517
  %v733 = vadd.f32 %v302, %v516
  %v734 = vadd.f32 %v304, %v518
  %v735 = vadd.f32 %v305, %v520
  %v736 = vadd.f32 %v306, %v519
  %v737 = vadd.f32 %v308, %v521
  %v738 = vadd.f32 %v309, %v523
  %v739 = vadd.f32 %v310, %v522
  %v740 = vadd.f32 %v312, %v524
  %v741 = vadd.f32 %v313, %v526
  %v742 = vadd.f32 %v314, %v525
  %v743 = vadd.f32 %v316, %v527
  %v744 = vadd.f32 %v317, %v529
  %v745 = vadd.f32 %v318, %v528
  %v746 = vadd.f32 %v320, %v530
  %v747 = vadd.f32 %v321, %v532
  %v748 = vadd.f32 %v322, %v531
  %v749 = vadd.f32 %v324, %v533
  %v750 = vadd.f32 %v325, %v535
  %v751 = vadd.f32 %v326, %v534
  %v752 = vadd.f32 %v328, %v536
  %v753 = vadd.f32 %v329, %v538
  %v754 = vadd.f32 %v330, %v537
  %v755 = vadd.f32 %v332, %v539
  %v756 = vadd.f32 %v333, %v541
  %v757 = vadd.f32 %v334, %v540
  %v758 = vadd.f32 %v336, %v542
  %v759 = vadd.f32 %v337, %v544
  %v760 = vadd.f32 %v338, %v543
  %v761 = vadd.f32 %v340, %v545
  %v762 = vadd.f32 %v341, %v547
  %v763 = vadd.f32 %v342, %v546
  %v764 = vadd.f32 %v344, %v548
  %v765 = vadd.f32 %v345, %v550
  %v766 = vadd.f32 %v346, %v549
  %v767 = vadd.f32 %v348, %v551
  %v768 = vadd.f32 %v349, %v553
  %v769 = vadd.f32 %v350, %v552
  %v770 = vadd.f32 %v352, %v554
  %v771 = vadd.f32 %v353, %v556
  %v772 = vadd.f32 %v354, %v555
  %v773 = vadd.f32 %v356, %v557
  %v774 = vadd.f32 %v357, %v559
  %v775 = vadd.f32 %v358, %v558
  %v776 = vadd.f32 %v360, %v560
  %v777 = vadd.f32 %v361, %v562
  %v778 = vadd.f32 %v362, %v561
  %v779 = vadd.f32 %v364, %v563
  %v780 = vadd.f32 %v365, %v565
  %v781 = vadd.f32 %v366, %v564
  %v782 = vadd.f32 %v368, %v566
  %v783 = vadd.f32 %v369, %v568
  %v784 = vadd.f32 %v370, %v567
  %v785 = vadd.f32 %v372, %v569
  %v786 = vadd.f32 %v373, %v571
  %v787 = vadd.f32 %v374, %v570
  %v788 = vadd.f32 %v376, %v572
  %v789 = vadd.f32 %v377, %v574
  %v790 = vadd.f32 %v378, %v573
  %v791 = vadd.f32 %v380, %v575
  %v792 = vadd.f32 %v381, %v577
  %v793 = vadd.f32 %v382, %v576
  %v794 = vadd.f32 %v384, %v578
  %v795 = vadd.f32 %v385, %v580
  %v796 = vadd.f32 %v386, %v579
  %v797 = vadd.f32 %v388, %v581
  %v798 = vadd.f32 %v389, %v583
  %v799 = vadd.f32 %v390, %v582
  %v800 = vadd.f32 %v392, %v584
  %v801 = vadd.f32 %v393, %v586
  %v802 = vadd.f32 %v394, %v585
  %v803 = vadd.f32 %v396, %v587
  %v804 = vadd.f32 %v397, %v589
  %v805 = vadd.f32 %v398, %v588
  %v806 = vadd.f32 %v400, %v590
  %v807 = vadd.f32 %v401, %v592
  %v808 = vadd.f32 %v402, %v591
  %v809 = vadd.f32 %v404, %v593
  %v810 = vadd.f32 %v405, %v595
  %v811 = vadd.f32 %v406, %v594
  %v812 = vadd.f32 %v408, %v596
  %v813 = vadd.f32 %v409, %v598
  %v814 = vadd.f32 %v410, %v597
  %v815 = vadd.f32 %v412, %v599
  %v816 = vadd.f32 %v413, %v601
  %v817 = vadd.f32 %v414, %v600
  %v818 = vadd.f32 %v416, %v602
  %v819 = vadd.f32 %v417, %v604
  %v820 = vadd.f32 %v418, %v603
  %v821 = vadd.f32 %v420, %v605
  %v822 = vadd.f32 %v421, %v607
  %v823 = vadd.f32 %v422, %v606
  %v824 = vadd.f32 %v424, %v608
  %v825 = vadd.f32 %v425, %v610
  %v826 = vadd.f32 %v426, %v609
  %v827 = vadd.f32 %v428, %v611
  %v828 = vadd.f32 %v429, %v613
  %v829 = vadd.f32 %v430, %v612
  %v830 = vadd.f32 %v432, %v614
  %v831 = vadd.f32 %v433, %v616
  %v832 = vadd.f32 %v434, %v615
  %vm869 = vcmask 1045504
  %v870 = vrot.slane %v293, 2
  %v871 = vrot.slane %v294, 2
  %v872 = vsel %vm869, %v870, %v871
  %v873 = vrot.slane %v295, 2
  %v874 = vsel %vm869, %v871, %v873
  %v875 = vrot.slane %v297, 2
  %v876 = vrot.slane %v298, 2
  %v877 = vsel %vm869, %v875, %v876
  %v878 = vrot.slane %v299, 2
  %v879 = vsel %vm869, %v876, %v878
  %v880 = vrot.slane %v301, 2
  %v881 = vrot.slane %v302, 2
  %v882 = vsel %vm869, %v880, %v881
  %v883 = vrot.slane %v303, 2
  %v884 = vsel %vm869, %v881, %v883
  %v885 = vrot.slane %v305, 2
  %v886 = vrot.slane %v306, 2
  %v887 = vsel %vm869, %v885, %v886
  %v888 = vrot.slane %v307, 2
  %v889 = vsel %vm869, %v886, %v888
  %v890 = vrot.slane %v309, 2
  %v891 = vrot.slane %v310, 2
  %v892 = vsel %vm869, %v890, %v891
  %v893 = vrot.slane %v311, 2
  %v894 = vsel %vm869, %v891, %v893
  %v895 = vrot.slane %v313, 2
  %v896 = vrot.slane %v314, 2
  %v897 = vsel %vm869, %v895, %v896
  %v898 = vrot.slane %v315, 2
  %v899 = vsel %vm869, %v896, %v898
  %v900 = vrot.slane %v317, 2
  %v901 = vrot.slane %v318, 2
  %v902 = vsel %vm869, %v900, %v901
  %v903 = vrot.slane %v319, 2
  %v904 = vsel %vm869, %v901, %v903
  %v905 = vrot.slane %v321, 2
  %v906 = vrot.slane %v322, 2
  %v907 = vsel %vm869, %v905, %v906
  %v908 = vrot.slane %v323, 2
  %v909 = vsel %vm869, %v906, %v908
  %v910 = vrot.slane %v325, 2
  %v911 = vrot.slane %v326, 2
  %v912 = vsel %vm869, %v910, %v911
  %v913 = vrot.slane %v327, 2
  %v914 = vsel %vm869, %v911, %v913
  %v915 = vrot.slane %v329, 2
  %v916 = vrot.slane %v330, 2
  %v917 = vsel %vm869, %v915, %v916
  %v918 = vrot.slane %v331, 2
  %v919 = vsel %vm869, %v916, %v918
  %v920 = vrot.slane %v333, 2
  %v921 = vrot.slane %v334, 2
  %v922 = vsel %vm869, %v920, %v921
  %v923 = vrot.slane %v335, 2
  %v924 = vsel %vm869, %v921, %v923
  %v925 = vrot.slane %v337, 2
  %v926 = vrot.slane %v338, 2
  %v927 = vsel %vm869, %v925, %v926
  %v928 = vrot.slane %v339, 2
  %v929 = vsel %vm869, %v926, %v928
  %v930 = vrot.slane %v341, 2
  %v931 = vrot.slane %v342, 2
  %v932 = vsel %vm869, %v930, %v931
  %v933 = vrot.slane %v343, 2
  %v934 = vsel %vm869, %v931, %v933
  %v935 = vrot.slane %v345, 2
  %v936 = vrot.slane %v346, 2
  %v937 = vsel %vm869, %v935, %v936
  %v938 = vrot.slane %v347, 2
  %v939 = vsel %vm869, %v936, %v938
  %v940 = vrot.slane %v349, 2
  %v941 = vrot.slane %v350, 2
  %v942 = vsel %vm869, %v940, %v941
  %v943 = vrot.slane %v351, 2
  %v944 = vsel %vm869, %v941, %v943
  %v945 = vrot.slane %v353, 2
  %v946 = vrot.slane %v354, 2
  %v947 = vsel %vm869, %v945, %v946
  %v948 = vrot.slane %v355, 2
  %v949 = vsel %vm869, %v946, %v948
  %v950 = vrot.slane %v357, 2
  %v951 = vrot.slane %v358, 2
  %v952 = vsel %vm869, %v950, %v951
  %v953 = vrot.slane %v359, 2
  %v954 = vsel %vm869, %v951, %v953
  %v955 = vrot.slane %v361, 2
  %v956 = vrot.slane %v362, 2
  %v957 = vsel %vm869, %v955, %v956
  %v958 = vrot.slane %v363, 2
  %v959 = vsel %vm869, %v956, %v958
  %v960 = vrot.slane %v365, 2
  %v961 = vrot.slane %v366, 2
  %v962 = vsel %vm869, %v960, %v961
  %v963 = vrot.slane %v367, 2
  %v964 = vsel %vm869, %v961, %v963
  %v965 = vrot.slane %v369, 2
  %v966 = vrot.slane %v370, 2
  %v967 = vsel %vm869, %v965, %v966
  %v968 = vrot.slane %v371, 2
  %v969 = vsel %vm869, %v966, %v968
  %v970 = vrot.slane %v373, 2
  %v971 = vrot.slane %v374, 2
  %v972 = vsel %vm869, %v970, %v971
  %v973 = vrot.slane %v375, 2
  %v974 = vsel %vm869, %v971, %v973
  %v975 = vrot.slane %v377, 2
  %v976 = vrot.slane %v378, 2
  %v977 = vsel %vm869, %v975, %v976
  %v978 = vrot.slane %v379, 2
  %v979 = vsel %vm869, %v976, %v978
  %v980 = vrot.slane %v381, 2
  %v981 = vrot.slane %v382, 2
  %v982 = vsel %vm869, %v980, %v981
  %v983 = vrot.slane %v383, 2
  %v984 = vsel %vm869, %v981, %v983
  %v985 = vrot.slane %v385, 2
  %v986 = vrot.slane %v386, 2
  %v987 = vsel %vm869, %v985, %v986
  %v988 = vrot.slane %v387, 2
  %v989 = vsel %vm869, %v986, %v988
  %v990 = vrot.slane %v389, 2
  %v991 = vrot.slane %v390, 2
  %v992 = vsel %vm869, %v990, %v991
  %v993 = vrot.slane %v391, 2
  %v994 = vsel %vm869, %v991, %v993
  %v995 = vrot.slane %v393, 2
  %v996 = vrot.slane %v394, 2
  %v997 = vsel %vm869, %v995, %v996
  %v998 = vrot.slane %v395, 2
  %v999 = vsel %vm869, %v996, %v998
  %v1000 = vrot.slane %v397, 2
  %v1001 = vrot.slane %v398, 2
  %v1002 = vsel %vm869, %v1000, %v1001
  %v1003 = vrot.slane %v399, 2
  %v1004 = vsel %vm869, %v1001, %v1003
  %v1005 = vrot.slane %v401, 2
  %v1006 = vrot.slane %v402, 2
  %v1007 = vsel %vm869, %v1005, %v1006
  %v1008 = vrot.slane %v403, 2
  %v1009 = vsel %vm869, %v1006, %v1008
  %v1010 = vrot.slane %v405, 2
  %v1011 = vrot.slane %v406, 2
  %v1012 = vsel %vm869, %v1010, %v1011
  %v1013 = vrot.slane %v407, 2
  %v1014 = vsel %vm869, %v1011, %v1013
  %v1015 = vrot.slane %v409, 2
  %v1016 = vrot.slane %v410, 2
  %v1017 = vsel %vm869, %v1015, %v1016
  %v1018 = vrot.slane %v411, 2
  %v1019 = vsel %vm869, %v1016, %v1018
  %v1020 = vrot.slane %v413, 2
  %v1021 = vrot.slane %v414, 2
  %v1022 = vsel %vm869, %v1020, %v1021
  %v1023 = vrot.slane %v415, 2
  %v1024 = vsel %vm869, %v1021, %v1023
  %v1025 = vrot.slane %v417, 2
  %v1026 = vrot.slane %v418, 2
  %v1027 = vsel %vm869, %v1025, %v1026
  %v1028 = vrot.slane %v419, 2
  %v1029 = vsel %vm869, %v1026, %v1028
  %v1030 = vrot.slane %v421, 2
  %v1031 = vrot.slane %v422, 2
  %v1032 = vsel %vm869, %v1030, %v1031
  %v1033 = vrot.slane %v423, 2
  %v1034 = vsel %vm869, %v1031, %v1033
  %v1035 = vrot.slane %v425, 2
  %v1036 = vrot.slane %v426, 2
  %v1037 = vsel %vm869, %v1035, %v1036
  %v1038 = vrot.slane %v427, 2
  %v1039 = vsel %vm869, %v1036, %v1038
  %v1040 = vrot.slane %v429, 2
  %v1041 = vrot.slane %v430, 2
  %v1042 = vsel %vm869, %v1040, %v1041
  %v1043 = vrot.slane %v431, 2
  %v1044 = vsel %vm869, %v1041, %v1043
  %v1045 = vrot.slane %v433, 2
  %v1046 = vrot.slane %v434, 2
  %v1047 = vsel %vm869, %v1045, %v1046
  %v1048 = vrot.slane %v435, 2
  %v1049 = vsel %vm869, %v1046, %v1048
  %v1158 = vadd.f32 %v725, %v870
  %v1159 = vadd.f32 %v726, %v872
  %v1160 = vadd.f32 %v727, %v874
  %v1161 = vadd.f32 %v728, %v875
  %v1162 = vadd.f32 %v729, %v877
  %v1163 = vadd.f32 %v730, %v879
  %v1164 = vadd.f32 %v731, %v880
  %v1165 = vadd.f32 %v732, %v882
  %v1166 = vadd.f32 %v733, %v884
  %v1167 = vadd.f32 %v734, %v885
  %v1168 = vadd.f32 %v735, %v887
  %v1169 = vadd.f32 %v736, %v889
  %v1170 = vadd.f32 %v737, %v890
  %v1171 = vadd.f32 %v738, %v892
  %v1172 = vadd.f32 %v739, %v894
  %v1173 = vadd.f32 %v740, %v895
  %v1174 = vadd.f32 %v741, %v897
  %v1175 = vadd.f32 %v742, %v899
  %v1176 = vadd.f32 %v743, %v900
  %v1177 = vadd.f32 %v744, %v902
  %v1178 = vadd.f32 %v745, %v904
  %v1179 = vadd.f32 %v746, %v905
  %v1180 = vadd.f32 %v747, %v907
  %v1181 = vadd.f32 %v748, %v909
  %v1182 = vadd.f32 %v749, %v910
  %v1183 = vadd.f32 %v750, %v912
  %v1184 = vadd.f32 %v751, %v914
  %v1185 = vadd.f32 %v752, %v915
  %v1186 = vadd.f32 %v753, %v917
  %v1187 = vadd.f32 %v754, %v919
  %v1188 = vadd.f32 %v755, %v920
  %v1189 = vadd.f32 %v756, %v922
  %v1190 = vadd.f32 %v757, %v924
  %v1191 = vadd.f32 %v758, %v925
  %v1192 = vadd.f32 %v759, %v927
  %v1193 = vadd.f32 %v760, %v929
  %v1194 = vadd.f32 %v761, %v930
  %v1195 = vadd.f32 %v762, %v932
  %v1196 = vadd.f32 %v763, %v934
  %v1197 = vadd.f32 %v764, %v935
  %v1198 = vadd.f32 %v765, %v937
  %v1199 = vadd.f32 %v766, %v939
  %v1200 = vadd.f32 %v767, %v940
  %v1201 = vadd.f32 %v768, %v942
  %v1202 = vadd.f32 %v769, %v944
  %v1203 = vadd.f32 %v770, %v945
  %v1204 = vadd.f32 %v771, %v947
  %v1205 = vadd.f32 %v772, %v949
  %v1206 = vadd.f32 %v773, %v950
  %v1207 = vadd.f32 %v774, %v952
  %v1208 = vadd.f32 %v775, %v954
  %v1209 = vadd.f32 %v776, %v955
  %v1210 = vadd.f32 %v777, %v957
  %v1211 = vadd.f32 %v778, %v959
  %v1212 = vadd.f32 %v779, %v960
  %v1213 = vadd.f32 %v780, %v962
  %v1214 = vadd.f32 %v781, %v964
  %v1215 = vadd.f32 %v782, %v965
  %v1216 = vadd.f32 %v783, %v967
  %v1217 = vadd.f32 %v784, %v969
  %v1218 = vadd.f32 %v785, %v970
  %v1219 = vadd.f32 %v786, %v972
  %v1220 = vadd.f32 %v787, %v974
  %v1221 = vadd.f32 %v788, %v975
  %v1222 = vadd.f32 %v789, %v977
  %v1223 = vadd.f32 %v790, %v979
  %v1224 = vadd.f32 %v791, %v980
  %v1225 = vadd.f32 %v792, %v982
  %v1226 = vadd.f32 %v793, %v984
  %v1227 = vadd.f32 %v794, %v985
  %v1228 = vadd.f32 %v795, %v987
  %v1229 = vadd.f32 %v796, %v989
  %v1230 = vadd.f32 %v797, %v990
  %v1231 = vadd.f32 %v798, %v992
  %v1232 = vadd.f32 %v799, %v994
  %v1233 = vadd.f32 %v800, %v995
  %v1234 = vadd.f32 %v801, %v997
  %v1235 = vadd.f32 %v802, %v999
  %v1236 = vadd.f32 %v803, %v1000
  %v1237 = vadd.f32 %v804, %v1002
  %v1238 = vadd.f32 %v805, %v1004
  %v1239 = vadd.f32 %v806, %v1005
  %v1240 = vadd.f32 %v807, %v1007
  %v1241 = vadd.f32 %v808, %v1009
  %v1242 = vadd.f32 %v809, %v1010
  %v1243 = vadd.f32 %v810, %v1012
  %v1244 = vadd.f32 %v811, %v1014
  %v1245 = vadd.f32 %v812, %v1015
  %v1246 = vadd.f32 %v813, %v1017
  %v1247 = vadd.f32 %v814, %v1019
  %v1248 = vadd.f32 %v815, %v1020
  %v1249 = vadd.f32 %v816, %v1022
  %v1250 = vadd.f32 %v817, %v1024
  %v1251 = vadd.f32 %v818, %v1025
  %v1252 = vadd.f32 %v819, %v1027
  %v1253 = vadd.f32 %v820, %v1029
  %v1254 = vadd.f32 %v821, %v1030
  %v1255 = vadd.f32 %v822, %v1032
  %v1256 = vadd.f32 %v823, %v1034
  %v1257 = vadd.f32 %v824, %v1035
  %v1258 = vadd.f32 %v825, %v1037
  %v1259 = vadd.f32 %v826, %v1039
  %v1260 = vadd.f32 %v827, %v1040
  %v1261 = vadd.f32 %v828, %v1042
  %v1262 = vadd.f32 %v829, %v1044
  %v1263 = vadd.f32 %v830, %v1045
  %v1264 = vadd.f32 %v831, %v1047
  %v1265 = vadd.f32 %v832, %v1049
  %v1266 = vadd.f32 %v1158, %v1161
  %v1267 = vadd.f32 %v1159, %v1162
  %v1268 = vadd.f32 %v1160, %v1163
  %v1269 = vadd.f32 %v1161, %v1164
  %v1270 = vadd.f32 %v1162, %v1165
  %v1271 = vadd.f32 %v1163, %v1166
  %v1272 = vadd.f32 %v1164, %v1167
  %v1273 = vadd.f32 %v1165, %v1168
  %v1274 = vadd.f32 %v1166, %v1169
  %v1275 = vadd.f32 %v1167, %v1170
  %v1276 = vadd.f32 %v1168, %v1171
  %v1277 = vadd.f32 %v1169, %v1172
  %v1278 = vadd.f32 %v1170, %v1173
  %v1279 = vadd.f32 %v1171, %v1174
  %v1280 = vadd.f32 %v1172, %v1175
  %v1281 = vadd.f32 %v1173, %v1176
  %v1282 = vadd.f32 %v1174, %v1177
  %v1283 = vadd.f32 %v1175, %v1178
  %v1284 = vadd.f32 %v1176, %v1179
  %v1285 = vadd.f32 %v1177, %v1180
  %v1286 = vadd.f32 %v1178, %v1181
  %v1287 = vadd.f32 %v1179, %v1182
  %v1288 = vadd.f32 %v1180, %v1183
  %v1289 = vadd.f32 %v1181, %v1184
  %v1290 = vadd.f32 %v1182, %v1185
  %v1291 = vadd.f32 %v1183, %v1186
  %v1292 = vadd.f32 %v1184, %v1187
  %v1293 = vadd.f32 %v1185, %v1188
  %v1294 = vadd.f32 %v1186, %v1189
  %v1295 = vadd.f32 %v1187, %v1190
  %v1296 = vadd.f32 %v1188, %v1191
  %v1297 = vadd.f32 %v1189, %v1192
  %v1298 = vadd.f32 %v1190, %v1193
  %v1299 = vadd.f32 %v1191, %v1194
  %v1300 = vadd.f32 %v1192, %v1195
  %v1301 = vadd.f32 %v1193, %v1196
  %v1302 = vadd.f32 %v1194, %v1197
  %v1303 = vadd.f32 %v1195, %v1198
  %v1304 = vadd.f32 %v1196, %v1199
  %v1305 = vadd.f32 %v1197, %v1200
  %v1306 = vadd.f32 %v1198, %v1201
  %v1307 = vadd.f32 %v1199, %v1202
  %v1308 = vadd.f32 %v1200, %v1203
  %v1309 = vadd.f32 %v1201, %v1204
  %v1310 = vadd.f32 %v1202, %v1205
  %v1311 = vadd.f32 %v1203, %v1206
  %v1312 = vadd.f32 %v1204, %v1207
  %v1313 = vadd.f32 %v1205, %v1208
  %v1314 = vadd.f32 %v1212, %v1215
  %v1315 = vadd.f32 %v1213, %v1216
  %v1316 = vadd.f32 %v1214, %v1217
  %v1317 = vadd.f32 %v1215, %v1218
  %v1318 = vadd.f32 %v1216, %v1219
  %v1319 = vadd.f32 %v1217, %v1220
  %v1320 = vadd.f32 %v1218, %v1221
  %v1321 = vadd.f32 %v1219, %v1222
  %v1322 = vadd.f32 %v1220, %v1223
  %v1323 = vadd.f32 %v1221, %v1224
  %v1324 = vadd.f32 %v1222, %v1225
  %v1325 = vadd.f32 %v1223, %v1226
  %v1326 = vadd.f32 %v1224, %v1227
  %v1327 = vadd.f32 %v1225, %v1228
  %v1328 = vadd.f32 %v1226, %v1229
  %v1329 = vadd.f32 %v1227, %v1230
  %v1330 = vadd.f32 %v1228, %v1231
  %v1331 = vadd.f32 %v1229, %v1232
  %v1332 = vadd.f32 %v1230, %v1233
  %v1333 = vadd.f32 %v1231, %v1234
  %v1334 = vadd.f32 %v1232, %v1235
  %v1335 = vadd.f32 %v1233, %v1236
  %v1336 = vadd.f32 %v1234, %v1237
  %v1337 = vadd.f32 %v1235, %v1238
  %v1338 = vadd.f32 %v1236, %v1239
  %v1339 = vadd.f32 %v1237, %v1240
  %v1340 = vadd.f32 %v1238, %v1241
  %v1341 = vadd.f32 %v1239, %v1242
  %v1342 = vadd.f32 %v1240, %v1243
  %v1343 = vadd.f32 %v1241, %v1244
  %v1344 = vadd.f32 %v1242, %v1245
  %v1345 = vadd.f32 %v1243, %v1246
  %v1346 = vadd.f32 %v1244, %v1247
  %v1347 = vadd.f32 %v1245, %v1248
  %v1348 = vadd.f32 %v1246, %v1249
  %v1349 = vadd.f32 %v1247, %v1250
  %v1350 = vadd.f32 %v1248, %v1251
  %v1351 = vadd.f32 %v1249, %v1252
  %v1352 = vadd.f32 %v1250, %v1253
  %v1353 = vadd.f32 %v1251, %v1254
  %v1354 = vadd.f32 %v1252, %v1255
  %v1355 = vadd.f32 %v1253, %v1256
  %v1356 = vadd.f32 %v1254, %v1257
  %v1357 = vadd.f32 %v1255, %v1258
  %v1358 = vadd.f32 %v1256, %v1259
  %v1359 = vadd.f32 %v1257, %v1260
  %v1360 = vadd.f32 %v1258, %v1261
  %v1361 = vadd.f32 %v1259, %v1262
  %v1362 = vadd.f32 %v1266, %v1164
  %v1363 = vadd.f32 %v1267, %v1165
  %v1364 = vadd.f32 %v1268, %v1166
  %v1365 = vadd.f32 %v1269, %v1167
  %v1366 = vadd.f32 %v1270, %v1168
  %v1367 = vadd.f32 %v1271, %v1169
  %v1368 = vadd.f32 %v1272, %v1170
  %v1369 = vadd.f32 %v1273, %v1171
  %v1370 = vadd.f32 %v1274, %v1172
  %v1371 = vadd.f32 %v1275, %v1173
  %v1372 = vadd.f32 %v1276, %v1174
  %v1373 = vadd.f32 %v1277, %v1175
  %v1374 = vadd.f32 %v1278, %v1176
  %v1375 = vadd.f32 %v1279, %v1177
  %v1376 = vadd.f32 %v1280, %v1178
  %v1377 = vadd.f32 %v1281, %v1179
  %v1378 = vadd.f32 %v1282, %v1180
  %v1379 = vadd.f32 %v1283, %v1181
  %v1380 = vadd.f32 %v1284, %v1182
  %v1381 = vadd.f32 %v1285, %v1183
  %v1382 = vadd.f32 %v1286, %v1184
  %v1383 = vadd.f32 %v1287, %v1185
  %v1384 = vadd.f32 %v1288, %v1186
  %v1385 = vadd.f32 %v1289, %v1187
  %v1386 = vadd.f32 %v1290, %v1188
  %v1387 = vadd.f32 %v1291, %v1189
  %v1388 = vadd.f32 %v1292, %v1190
  %v1389 = vadd.f32 %v1293, %v1191
  %v1390 = vadd.f32 %v1294, %v1192
  %v1391 = vadd.f32 %v1295, %v1193
  %v1392 = vadd.f32 %v1296, %v1194
  %v1393 = vadd.f32 %v1297, %v1195
  %v1394 = vadd.f32 %v1298, %v1196
  %v1395 = vadd.f32 %v1299, %v1197
  %v1396 = vadd.f32 %v1300, %v1198
  %v1397 = vadd.f32 %v1301, %v1199
  %v1398 = vadd.f32 %v1302, %v1200
  %v1399 = vadd.f32 %v1303, %v1201
  %v1400 = vadd.f32 %v1304, %v1202
  %v1401 = vadd.f32 %v1305, %v1203
  %v1402 = vadd.f32 %v1306, %v1204
  %v1403 = vadd.f32 %v1307, %v1205
  %v1404 = vadd.f32 %v1308, %v1206
  %v1405 = vadd.f32 %v1309, %v1207
  %v1406 = vadd.f32 %v1310, %v1208
  %v1407 = vadd.f32 %v1311, %v1209
  %v1408 = vadd.f32 %v1312, %v1210
  %v1409 = vadd.f32 %v1313, %v1211
  %v1410 = vadd.f32 %v1314, %v1218
  %v1411 = vadd.f32 %v1315, %v1219
  %v1412 = vadd.f32 %v1316, %v1220
  %v1413 = vadd.f32 %v1317, %v1221
  %v1414 = vadd.f32 %v1318, %v1222
  %v1415 = vadd.f32 %v1319, %v1223
  %v1416 = vadd.f32 %v1320, %v1224
  %v1417 = vadd.f32 %v1321, %v1225
  %v1418 = vadd.f32 %v1322, %v1226
  %v1419 = vadd.f32 %v1323, %v1227
  %v1420 = vadd.f32 %v1324, %v1228
  %v1421 = vadd.f32 %v1325, %v1229
  %v1422 = vadd.f32 %v1326, %v1230
  %v1423 = vadd.f32 %v1327, %v1231
  %v1424 = vadd.f32 %v1328, %v1232
  %v1425 = vadd.f32 %v1329, %v1233
  %v1426 = vadd.f32 %v1330, %v1234
  %v1427 = vadd.f32 %v1331, %v1235
  %v1428 = vadd.f32 %v1332, %v1236
  %v1429 = vadd.f32 %v1333, %v1237
  %v1430 = vadd.f32 %v1334, %v1238
  %v1431 = vadd.f32 %v1335, %v1239
  %v1432 = vadd.f32 %v1336, %v1240
  %v1433 = vadd.f32 %v1337, %v1241
  %v1434 = vadd.f32 %v1338, %v1242
  %v1435 = vadd.f32 %v1339, %v1243
  %v1436 = vadd.f32 %v1340, %v1244
  %v1437 = vadd.f32 %v1341, %v1245
  %v1438 = vadd.f32 %v1342, %v1246
  %v1439 = vadd.f32 %v1343, %v1247
  %v1440 = vadd.f32 %v1344, %v1248
  %v1441 = vadd.f32 %v1345, %v1249
  %v1442 = vadd.f32 %v1346, %v1250
  %v1443 = vadd.f32 %v1347, %v1251
  %v1444 = vadd.f32 %v1348, %v1252
  %v1445 = vadd.f32 %v1349, %v1253
  %v1446 = vadd.f32 %v1350, %v1254
  %v1447 = vadd.f32 %v1351, %v1255
  %v1448 = vadd.f32 %v1352, %v1256
  %v1449 = vadd.f32 %v1353, %v1257
  %v1450 = vadd.f32 %v1354, %v1258
  %v1451 = vadd.f32 %v1355, %v1259
  %v1452 = vadd.f32 %v1356, %v1260
  %v1453 = vadd.f32 %v1357, %v1261
  %v1454 = vadd.f32 %v1358, %v1262
  %v1455 = vadd.f32 %v1359, %v1263
  %v1456 = vadd.f32 %v1360, %v1264
  %v1457 = vadd.f32 %v1361, %v1265
  %v1458 = vld [vmem:[%s1] sm:$0xff]
  %v1459 = vld [vmem:[%s1 + $0x8] sm:$0xff]
  %v1460 = vld [vmem:[%s1 + $0x10] sm:$0xff]
  %v1461 = vld [vmem:[%s1 + $0x18] sm:$0xff]
  %v1462 = vld [vmem:[%s1 + $0x20] sm:$0xff]
  %v1463 = vld [vmem:[%s1 + $0x28] sm:$0xff]
  %v1464 = vld [vmem:[%s1 + $0x30] sm:$0xff]
  %v1465 = vld [vmem:[%s1 + $0x38] sm:$0xff]
  %v1466 = vld [vmem:[%s1 + $0x40] sm:$0xff]
  %v1467 = vld [vmem:[%s1 + $0x48] sm:$0xff]
  %v1468 = vld [vmem:[%s1 + $0x50] sm:$0xff]
  %v1469 = vld [vmem:[%s1 + $0x58] sm:$0xff]
  %v1470 = vld [vmem:[%s1 + $0x60] sm:$0xff]
  %v1471 = vld [vmem:[%s1 + $0x68] sm:$0xff]
  %v1472 = vld [vmem:[%s1 + $0x70] sm:$0xff]
  %v1473 = vld [vmem:[%s1 + $0x78] sm:$0xff]
  %v1474 = vld [vmem:[%s1 + $0x80] sm:$0xff]
  %v1475 = vld [vmem:[%s1 + $0x88] sm:$0xff]
  %v1476 = vld [vmem:[%s1 + $0x90] sm:$0xff]
  %v1477 = vld [vmem:[%s1 + $0x98] sm:$0xff]
  %v1478 = vld [vmem:[%s1 + $0xa0] sm:$0xff]
  %v1479 = vld [vmem:[%s1 + $0xa8] sm:$0xff]
  %v1480 = vld [vmem:[%s1 + $0xb0] sm:$0xff]
  %v1481 = vld [vmem:[%s1 + $0xb8] sm:$0xff]
  %v1482 = vld [vmem:[%s1 + $0xc0] sm:$0xff]
  %v1483 = vld [vmem:[%s1 + $0xc8] sm:$0xff]
  %v1484 = vld [vmem:[%s1 + $0xd0] sm:$0xff]
  %v1485 = vld [vmem:[%s1 + $0xd8] sm:$0xff]
  %v1486 = vld [vmem:[%s1 + $0xe0] sm:$0xff]
  %v1487 = vld [vmem:[%s1 + $0xe8] sm:$0xff]
  %v1488 = vld [vmem:[%s1 + $0xf0] sm:$0xff]
  %v1489 = vld [vmem:[%s1 + $0xf8] sm:$0xff]
  %v1522 = vrot.slane %v1458, 1
  %v1523 = vrot.slane %v1459, 1
  %v1524 = vsel %vm508, %v1522, %v1523
  %v1525 = vrot.slane %v1460, 1
  %v1526 = vrot.slane %v1461, 1
  %v1527 = vsel %vm508, %v1525, %v1526
  %v1528 = vrot.slane %v1462, 1
  %v1529 = vrot.slane %v1463, 1
  %v1530 = vsel %vm508, %v1528, %v1529
  %v1531 = vrot.slane %v1464, 1
  %v1532 = vrot.slane %v1465, 1
  %v1533 = vsel %vm508, %v1531, %v1532
  %v1534 = vrot.slane %v1466, 1
  %v1535 = vrot.slane %v1467, 1
  %v1536 = vsel %vm508, %v1534, %v1535
  %v1537 = vrot.slane %v1468, 1
  %v1538 = vrot.slane %v1469, 1
  %v1539 = vsel %vm508, %v1537, %v1538
  %v1540 = vrot.slane %v1470, 1
  %v1541 = vrot.slane %v1471, 1
  %v1542 = vsel %vm508, %v1540, %v1541
  %v1543 = vrot.slane %v1472, 1
  %v1544 = vrot.slane %v1473, 1
  %v1545 = vsel %vm508, %v1543, %v1544
  %v1546 = vrot.slane %v1474, 1
  %v1547 = vrot.slane %v1475, 1
  %v1548 = vsel %vm508, %v1546, %v1547
  %v1549 = vrot.slane %v1476, 1
  %v1550 = vrot.slane %v1477, 1
  %v1551 = vsel %vm508, %v1549, %v1550
  %v1552 = vrot.slane %v1478, 1
  %v1553 = vrot.slane %v1479, 1
  %v1554 = vsel %vm508, %v1552, %v1553
  %v1555 = vrot.slane %v1480, 1
  %v1556 = vrot.slane %v1481, 1
  %v1557 = vsel %vm508, %v1555, %v1556
  %v1558 = vrot.slane %v1482, 1
  %v1559 = vrot.slane %v1483, 1
  %v1560 = vsel %vm508, %v1558, %v1559
  %v1561 = vrot.slane %v1484, 1
  %v1562 = vrot.slane %v1485, 1
  %v1563 = vsel %vm508, %v1561, %v1562
  %v1564 = vrot.slane %v1486, 1
  %v1565 = vrot.slane %v1487, 1
  %v1566 = vsel %vm508, %v1564, %v1565
  %v1567 = vrot.slane %v1488, 1
  %v1568 = vrot.slane %v1489, 1
  %v1569 = vsel %vm508, %v1567, %v1568
  %v1618 = vmul.f32 %v1362, %v1522
  %v1619 = vmul.f32 %v1363, %v1524
  %v1620 = vmul.f32 %v1364, %v1523
  %v1621 = vmul.f32 %v1365, %v1525
  %v1622 = vmul.f32 %v1366, %v1527
  %v1623 = vmul.f32 %v1367, %v1526
  %v1624 = vmul.f32 %v1368, %v1528
  %v1625 = vmul.f32 %v1369, %v1530
  %v1626 = vmul.f32 %v1370, %v1529
  %v1627 = vmul.f32 %v1371, %v1531
  %v1628 = vmul.f32 %v1372, %v1533
  %v1629 = vmul.f32 %v1373, %v1532
  %v1630 = vmul.f32 %v1374, %v1534
  %v1631 = vmul.f32 %v1375, %v1536
  %v1632 = vmul.f32 %v1376, %v1535
  %v1633 = vmul.f32 %v1377, %v1537
  %v1634 = vmul.f32 %v1378, %v1539
  %v1635 = vmul.f32 %v1379, %v1538
  %v1636 = vmul.f32 %v1380, %v1540
  %v1637 = vmul.f32 %v1381, %v1542
  %v1638 = vmul.f32 %v1382, %v1541
  %v1639 = vmul.f32 %v1383, %v1543
  %v1640 = vmul.f32 %v1384, %v1545
  %v1641 = vmul.f32 %v1385, %v1544
  %v1642 = vmul.f32 %v1386, %v1546
  %v1643 = vmul.f32 %v1387, %v1548
  %v1644 = vmul.f32 %v1388, %v1547
  %v1645 = vmul.f32 %v1389, %v1549
  %v1646 = vmul.f32 %v1390, %v1551
  %v1647 = vmul.f32 %v1391, %v1550
  %v1648 = vmul.f32 %v1392, %v1552
  %v1649 = vmul.f32 %v1393, %v1554
  %v1650 = vmul.f32 %v1394, %v1553
  %v1651 = vmul.f32 %v1395, %v1555
  %v1652 = vmul.f32 %v1396, %v1557
  %v1653 = vmul.f32 %v1397, %v1556
  %v1654 = vmul.f32 %v1398, %v1558
  %v1655 = vmul.f32 %v1399, %v1560
  %v1656 = vmul.f32 %v1400, %v1559
  %v1657 = vmul.f32 %v1401, %v1561
  %v1658 = vmul.f32 %v1402, %v1563
  %v1659 = vmul.f32 %v1403, %v1562
  %v1660 = vmul.f32 %v1404, %v1564
  %v1661 = vmul.f32 %v1405, %v1566
  %v1662 = vmul.f32 %v1406, %v1565
  %v1663 = vmul.f32 %v1407, %v1567
  %v1664 = vmul.f32 %v1408, %v1569
  %v1665 = vmul.f32 %v1409, %v1568
  %v1666 = vmul.f32 %v1410, %v1522
  %v1667 = vmul.f32 %v1411, %v1524
  %v1668 = vmul.f32 %v1412, %v1523
  %v1669 = vmul.f32 %v1413, %v1525
  %v1670 = vmul.f32 %v1414, %v1527
  %v1671 = vmul.f32 %v1415, %v1526
  %v1672 = vmul.f32 %v1416, %v1528
  %v1673 = vmul.f32 %v1417, %v1530
  %v1674 = vmul.f32 %v1418, %v1529
  %v1675 = vmul.f32 %v1419, %v1531
  %v1676 = vmul.f32 %v1420, %v1533
  %v1677 = vmul.f32 %v1421, %v1532
  %v1678 = vmul.f32 %v1422, %v1534
  %v1679 = vmul.f32 %v1423, %v1536
  %v1680 = vmul.f32 %v1424, %v1535
  %v1681 = vmul.f32 %v1425, %v1537
  %v1682 = vmul.f32 %v1426, %v1539
  %v1683 = vmul.f32 %v1427, %v1538
  %v1684 = vmul.f32 %v1428, %v1540
  %v1685 = vmul.f32 %v1429, %v1542
  %v1686 = vmul.f32 %v1430, %v1541
  %v1687 = vmul.f32 %v1431, %v1543
  %v1688 = vmul.f32 %v1432, %v1545
  %v1689 = vmul.f32 %v1433, %v1544
  %v1690 = vmul.f32 %v1434, %v1546
  %v1691 = vmul.f32 %v1435, %v1548
  %v1692 = vmul.f32 %v1436, %v1547
  %v1693 = vmul.f32 %v1437, %v1549
  %v1694 = vmul.f32 %v1438, %v1551
  %v1695 = vmul.f32 %v1439, %v1550
  %v1696 = vmul.f32 %v1440, %v1552
  %v1697 = vmul.f32 %v1441, %v1554
  %v1698 = vmul.f32 %v1442, %v1553
  %v1699 = vmul.f32 %v1443, %v1555
  %v1700 = vmul.f32 %v1444, %v1557
  %v1701 = vmul.f32 %v1445, %v1556
  %v1702 = vmul.f32 %v1446, %v1558
  %v1703 = vmul.f32 %v1447, %v1560
  %v1704 = vmul.f32 %v1448, %v1559
  %v1705 = vmul.f32 %v1449, %v1561
  %v1706 = vmul.f32 %v1450, %v1563
  %v1707 = vmul.f32 %v1451, %v1562
  %v1708 = vmul.f32 %v1452, %v1564
  %v1709 = vmul.f32 %v1453, %v1566
  %v1710 = vmul.f32 %v1454, %v1565
  %v1711 = vmul.f32 %v1455, %v1567
  %v1712 = vmul.f32 %v1456, %v1569
  %v1713 = vmul.f32 %v1457, %v1568
  %vm1810 = vcmask 1040384
  %v1811 = vrot.slane %v1618, 7
  %v1812 = vrot.slane %v1619, 7
  %v1813 = vsel %vm1810, %v1811, %v1812
  %v1814 = vrot.slane %v1620, 7
  %v1815 = vsel %vm1810, %v1812, %v1814
  %v1816 = vrot.slane %v1621, 7
  %v1817 = vrot.slane %v1622, 7
  %v1818 = vsel %vm1810, %v1816, %v1817
  %v1819 = vrot.slane %v1623, 7
  %v1820 = vsel %vm1810, %v1817, %v1819
  %v1821 = vrot.slane %v1624, 7
  %v1822 = vrot.slane %v1625, 7
  %v1823 = vsel %vm1810, %v1821, %v1822
  %v1824 = vrot.slane %v1626, 7
  %v1825 = vsel %vm1810, %v1822, %v1824
  %v1826 = vrot.slane %v1627, 7
  %v1827 = vrot.slane %v1628, 7
  %v1828 = vsel %vm1810, %v1826, %v1827
  %v1829 = vrot.slane %v1629, 7
  %v1830 = vsel %vm1810, %v1827, %v1829
  %v1831 = vrot.slane %v1630, 7
  %v1832 = vrot.slane %v1631, 7
  %v1833 = vsel %vm1810, %v1831, %v1832
  %v1834 = vrot.slane %v1632, 7
  %v1835 = vsel %vm1810, %v1832, %v1834
  %v1836 = vrot.slane %v1633, 7
  %v1837 = vrot.slane %v1634, 7
  %v1838 = vsel %vm1810, %v1836, %v1837
  %v1839 = vrot.slane %v1635, 7
  %v1840 = vsel %vm1810, %v1837, %v1839
  %v1841 = vrot.slane %v1636, 7
  %v1842 = vrot.slane %v1637, 7
  %v1843 = vsel %vm1810, %v1841, %v1842
  %v1844 = vrot.slane %v1638, 7
  %v1845 = vsel %vm1810, %v1842, %v1844
  %v1846 = vrot.slane %v1639, 7
  %v1847 = vrot.slane %v1640, 7
  %v1848 = vsel %vm1810, %v1846, %v1847
  %v1849 = vrot.slane %v1641, 7
  %v1850 = vsel %vm1810, %v1847, %v1849
  %v1851 = vrot.slane %v1642, 7
  %v1852 = vrot.slane %v1643, 7
  %v1853 = vsel %vm1810, %v1851, %v1852
  %v1854 = vrot.slane %v1644, 7
  %v1855 = vsel %vm1810, %v1852, %v1854
  %v1856 = vrot.slane %v1645, 7
  %v1857 = vrot.slane %v1646, 7
  %v1858 = vsel %vm1810, %v1856, %v1857
  %v1859 = vrot.slane %v1647, 7
  %v1860 = vsel %vm1810, %v1857, %v1859
  %v1861 = vrot.slane %v1648, 7
  %v1862 = vrot.slane %v1649, 7
  %v1863 = vsel %vm1810, %v1861, %v1862
  %v1864 = vrot.slane %v1650, 7
  %v1865 = vsel %vm1810, %v1862, %v1864
  %v1866 = vrot.slane %v1651, 7
  %v1867 = vrot.slane %v1652, 7
  %v1868 = vsel %vm1810, %v1866, %v1867
  %v1869 = vrot.slane %v1653, 7
  %v1870 = vsel %vm1810, %v1867, %v1869
  %v1871 = vrot.slane %v1654, 7
  %v1872 = vrot.slane %v1655, 7
  %v1873 = vsel %vm1810, %v1871, %v1872
  %v1874 = vrot.slane %v1656, 7
  %v1875 = vsel %vm1810, %v1872, %v1874
  %v1876 = vrot.slane %v1657, 7
  %v1877 = vrot.slane %v1658, 7
  %v1878 = vsel %vm1810, %v1876, %v1877
  %v1879 = vrot.slane %v1659, 7
  %v1880 = vsel %vm1810, %v1877, %v1879
  %v1881 = vrot.slane %v1660, 7
  %v1882 = vrot.slane %v1661, 7
  %v1883 = vsel %vm1810, %v1881, %v1882
  %v1884 = vrot.slane %v1662, 7
  %v1885 = vsel %vm1810, %v1882, %v1884
  %v1886 = vrot.slane %v1663, 7
  %v1887 = vrot.slane %v1664, 7
  %v1888 = vsel %vm1810, %v1886, %v1887
  %v1889 = vrot.slane %v1665, 7
  %v1890 = vsel %vm1810, %v1887, %v1889
  %v1891 = vrot.slane %v1666, 7
  %v1892 = vrot.slane %v1667, 7
  %v1893 = vsel %vm1810, %v1891, %v1892
  %v1894 = vrot.slane %v1668, 7
  %v1895 = vsel %vm1810, %v1892, %v1894
  %v1896 = vrot.slane %v1669, 7
  %v1897 = vrot.slane %v1670, 7
  %v1898 = vsel %vm1810, %v1896, %v1897
  %v1899 = vrot.slane %v1671, 7
  %v1900 = vsel %vm1810, %v1897, %v1899
  %v1901 = vrot.slane %v1672, 7
  %v1902 = vrot.slane %v1673, 7
  %v1903 = vsel %vm1810, %v1901, %v1902
  %v1904 = vrot.slane %v1674, 7
  %v1905 = vsel %vm1810, %v1902, %v1904
  %v1906 = vrot.slane %v1675, 7
  %v1907 = vrot.slane %v1676, 7
  %v1908 = vsel %vm1810, %v1906, %v1907
  %v1909 = vrot.slane %v1677, 7
  %v1910 = vsel %vm1810, %v1907, %v1909
  %v1911 = vrot.slane %v1678, 7
  %v1912 = vrot.slane %v1679, 7
  %v1913 = vsel %vm1810, %v1911, %v1912
  %v1914 = vrot.slane %v1680, 7
  %v1915 = vsel %vm1810, %v1912, %v1914
  %v1916 = vrot.slane %v1681, 7
  %v1917 = vrot.slane %v1682, 7
  %v1918 = vsel %vm1810, %v1916, %v1917
  %v1919 = vrot.slane %v1683, 7
  %v1920 = vsel %vm1810, %v1917, %v1919
  %v1921 = vrot.slane %v1684, 7
  %v1922 = vrot.slane %v1685, 7
  %v1923 = vsel %vm1810, %v1921, %v1922
  %v1924 = vrot.slane %v1686, 7
  %v1925 = vsel %vm1810, %v1922, %v1924
  %v1926 = vrot.slane %v1687, 7
  %v1927 = vrot.slane %v1688, 7
  %v1928 = vsel %vm1810, %v1926, %v1927
  %v1929 = vrot.slane %v1689, 7
  %v1930 = vsel %vm1810, %v1927, %v1929
  %v1931 = vrot.slane %v1690, 7
  %v1932 = vrot.slane %v1691, 7
  %v1933 = vsel %vm1810, %v1931, %v1932
  %v1934 = vrot.slane %v1692, 7
  %v1935 = vsel %vm1810, %v1932, %v1934
  %v1936 = vrot.slane %v1693, 7
  %v1937 = vrot.slane %v1694, 7
  %v1938 = vsel %vm1810, %v1936, %v1937
  %v1939 = vrot.slane %v1695, 7
  %v1940 = vsel %vm1810, %v1937, %v1939
  %v1941 = vrot.slane %v1696, 7
  %v1942 = vrot.slane %v1697, 7
  %v1943 = vsel %vm1810, %v1941, %v1942
  %v1944 = vrot.slane %v1698, 7
  %v1945 = vsel %vm1810, %v1942, %v1944
  %v1946 = vrot.slane %v1699, 7
  %v1947 = vrot.slane %v1700, 7
  %v1948 = vsel %vm1810, %v1946, %v1947
  %v1949 = vrot.slane %v1701, 7
  %v1950 = vsel %vm1810, %v1947, %v1949
  %v1951 = vrot.slane %v1702, 7
  %v1952 = vrot.slane %v1703, 7
  %v1953 = vsel %vm1810, %v1951, %v1952
  %v1954 = vrot.slane %v1704, 7
  %v1955 = vsel %vm1810, %v1952, %v1954
  %v1956 = vrot.slane %v1705, 7
  %v1957 = vrot.slane %v1706, 7
  %v1958 = vsel %vm1810, %v1956, %v1957
  %v1959 = vrot.slane %v1707, 7
  %v1960 = vsel %vm1810, %v1957, %v1959
  %v1961 = vrot.slane %v1708, 7
  %v1962 = vrot.slane %v1709, 7
  %v1963 = vsel %vm1810, %v1961, %v1962
  %v1964 = vrot.slane %v1710, 7
  %v1965 = vsel %vm1810, %v1962, %v1964
  %v1966 = vrot.slane %v1711, 7
  %v1967 = vrot.slane %v1712, 7
  %v1968 = vsel %vm1810, %v1966, %v1967
  %v1969 = vrot.slane %v1713, 7
  %v1970 = vsel %vm1810, %v1967, %v1969
  %v2035 = vsel %vm17, %v1813, 0.0
  %v2036 = vsel %vm17, %v1815, 0.0
  %v2037 = vadd.f32 %v2035, %v2036
  %v2038 = vsel %vm17, %v1818, 0.0
  %v2039 = vadd.f32 %v2037, %v2038
  %v2040 = vsel %vm17, %v1820, 0.0
  %v2041 = vadd.f32 %v2039, %v2040
  %v2042 = vsel %vm17, %v1823, 0.0
  %v2043 = vadd.f32 %v2041, %v2042
  %v2044 = vsel %vm17, %v1825, 0.0
  %v2045 = vadd.f32 %v2043, %v2044
  %v2046 = vsel %vm17, %v1828, 0.0
  %v2047 = vadd.f32 %v2045, %v2046
  %v2048 = vsel %vm17, %v1830, 0.0
  %v2049 = vadd.f32 %v2047, %v2048
  %v2050 = vsel %vm17, %v1833, 0.0
  %v2051 = vadd.f32 %v2049, %v2050
  %v2052 = vsel %vm17, %v1835, 0.0
  %v2053 = vadd.f32 %v2051, %v2052
  %v2054 = vsel %vm17, %v1838, 0.0
  %v2055 = vadd.f32 %v2053, %v2054
  %v2056 = vsel %vm17, %v1840, 0.0
  %v2057 = vadd.f32 %v2055, %v2056
  %v2058 = vsel %vm17, %v1843, 0.0
  %v2059 = vadd.f32 %v2057, %v2058
  %v2060 = vsel %vm17, %v1845, 0.0
  %v2061 = vadd.f32 %v2059, %v2060
  %v2062 = vsel %vm17, %v1848, 0.0
  %v2063 = vadd.f32 %v2061, %v2062
  %v2064 = vsel %vm17, %v1850, 0.0
  %v2065 = vadd.f32 %v2063, %v2064
  %v2066 = vsel %vm17, %v1853, 0.0
  %v2067 = vadd.f32 %v2065, %v2066
  %v2068 = vsel %vm17, %v1855, 0.0
  %v2069 = vadd.f32 %v2067, %v2068
  %v2070 = vsel %vm17, %v1858, 0.0
  %v2071 = vadd.f32 %v2069, %v2070
  %v2072 = vsel %vm17, %v1860, 0.0
  %v2073 = vadd.f32 %v2071, %v2072
  %v2074 = vsel %vm17, %v1863, 0.0
  %v2075 = vadd.f32 %v2073, %v2074
  %v2076 = vsel %vm17, %v1865, 0.0
  %v2077 = vadd.f32 %v2075, %v2076
  %v2078 = vsel %vm17, %v1868, 0.0
  %v2079 = vadd.f32 %v2077, %v2078
  %v2080 = vsel %vm17, %v1870, 0.0
  %v2081 = vadd.f32 %v2079, %v2080
  %v2082 = vsel %vm17, %v1873, 0.0
  %v2083 = vadd.f32 %v2081, %v2082
  %v2084 = vsel %vm17, %v1875, 0.0
  %v2085 = vadd.f32 %v2083, %v2084
  %v2086 = vsel %vm17, %v1878, 0.0
  %v2087 = vadd.f32 %v2085, %v2086
  %v2088 = vsel %vm17, %v1880, 0.0
  %v2089 = vadd.f32 %v2087, %v2088
  %v2090 = vsel %vm17, %v1883, 0.0
  %v2091 = vadd.f32 %v2089, %v2090
  %v2092 = vsel %vm17, %v1885, 0.0
  %v2093 = vadd.f32 %v2091, %v2092
  %v2094 = vsel %vm17, %v1888, 0.0
  %v2095 = vadd.f32 %v2093, %v2094
  %v2096 = vsel %vm17, %v1890, 0.0
  %v2097 = vadd.f32 %v2095, %v2096
  %v2098 = vsel %vm17, %v1893, 0.0
  %v2099 = vadd.f32 %v2097, %v2098
  %v2100 = vsel %vm17, %v1895, 0.0
  %v2101 = vadd.f32 %v2099, %v2100
  %v2102 = vsel %vm17, %v1898, 0.0
  %v2103 = vadd.f32 %v2101, %v2102
  %v2104 = vsel %vm17, %v1900, 0.0
  %v2105 = vadd.f32 %v2103, %v2104
  %v2106 = vsel %vm17, %v1903, 0.0
  %v2107 = vadd.f32 %v2105, %v2106
  %v2108 = vsel %vm17, %v1905, 0.0
  %v2109 = vadd.f32 %v2107, %v2108
  %v2110 = vsel %vm17, %v1908, 0.0
  %v2111 = vadd.f32 %v2109, %v2110
  %v2112 = vsel %vm17, %v1910, 0.0
  %v2113 = vadd.f32 %v2111, %v2112
  %v2114 = vsel %vm17, %v1913, 0.0
  %v2115 = vadd.f32 %v2113, %v2114
  %v2116 = vsel %vm17, %v1915, 0.0
  %v2117 = vadd.f32 %v2115, %v2116
  %v2118 = vsel %vm17, %v1918, 0.0
  %v2119 = vadd.f32 %v2117, %v2118
  %v2120 = vsel %vm17, %v1920, 0.0
  %v2121 = vadd.f32 %v2119, %v2120
  %v2122 = vsel %vm17, %v1923, 0.0
  %v2123 = vadd.f32 %v2121, %v2122
  %v2124 = vsel %vm17, %v1925, 0.0
  %v2125 = vadd.f32 %v2123, %v2124
  %v2126 = vsel %vm17, %v1928, 0.0
  %v2127 = vadd.f32 %v2125, %v2126
  %v2128 = vsel %vm17, %v1930, 0.0
  %v2129 = vadd.f32 %v2127, %v2128
  %v2130 = vsel %vm17, %v1933, 0.0
  %v2131 = vadd.f32 %v2129, %v2130
  %v2132 = vsel %vm17, %v1935, 0.0
  %v2133 = vadd.f32 %v2131, %v2132
  %v2134 = vsel %vm17, %v1938, 0.0
  %v2135 = vadd.f32 %v2133, %v2134
  %v2136 = vsel %vm17, %v1940, 0.0
  %v2137 = vadd.f32 %v2135, %v2136
  %v2138 = vsel %vm17, %v1943, 0.0
  %v2139 = vadd.f32 %v2137, %v2138
  %v2140 = vsel %vm17, %v1945, 0.0
  %v2141 = vadd.f32 %v2139, %v2140
  %v2142 = vsel %vm17, %v1948, 0.0
  %v2143 = vadd.f32 %v2141, %v2142
  %v2144 = vsel %vm17, %v1950, 0.0
  %v2145 = vadd.f32 %v2143, %v2144
  %v2146 = vsel %vm17, %v1953, 0.0
  %v2147 = vadd.f32 %v2145, %v2146
  %v2148 = vsel %vm17, %v1955, 0.0
  %v2149 = vadd.f32 %v2147, %v2148
  %v2150 = vsel %vm17, %v1958, 0.0
  %v2151 = vadd.f32 %v2149, %v2150
  %v2152 = vsel %vm17, %v1960, 0.0
  %v2153 = vadd.f32 %v2151, %v2152
  %v2154 = vsel %vm17, %v1963, 0.0
  %v2155 = vadd.f32 %v2153, %v2154
  %v2156 = vsel %vm17, %v1965, 0.0
  %v2157 = vadd.f32 %v2155, %v2156
  %v2158 = vsel %vm17, %v1968, 0.0
  %v2159 = vadd.f32 %v2157, %v2158
  %v2160 = vsel %vm17, %v1970, 0.0
  %v2161 = vadd.f32 %v2159, %v2160
  %v2162 = vrot.slane %v2161, 4
  %v2163 = vadd.f32 %v2161, %v2162
  %v2164 = vrot.slane %v2163, 2
  %v2165 = vadd.f32 %v2163, %v2164
  %v2166 = vrot.slane %v2165, 1
  %v2167 = vadd.f32 %v2165, %v2166
  %v2168 = vmul.f32 %v1618, %v1618
  %v2169 = vmul.f32 %v1619, %v1619
  %v2170 = vmul.f32 %v1620, %v1620
  %v2171 = vmul.f32 %v1621, %v1621
  %v2172 = vmul.f32 %v1622, %v1622
  %v2173 = vmul.f32 %v1623, %v1623
  %v2174 = vmul.f32 %v1624, %v1624
  %v2175 = vmul.f32 %v1625, %v1625
  %v2176 = vmul.f32 %v1626, %v1626
  %v2177 = vmul.f32 %v1627, %v1627
  %v2178 = vmul.f32 %v1628, %v1628
  %v2179 = vmul.f32 %v1629, %v1629
  %v2180 = vmul.f32 %v1630, %v1630
  %v2181 = vmul.f32 %v1631, %v1631
  %v2182 = vmul.f32 %v1632, %v1632
  %v2183 = vmul.f32 %v1633, %v1633
  %v2184 = vmul.f32 %v1634, %v1634
  %v2185 = vmul.f32 %v1635, %v1635
  %v2186 = vmul.f32 %v1636, %v1636
  %v2187 = vmul.f32 %v1637, %v1637
  %v2188 = vmul.f32 %v1638, %v1638
  %v2189 = vmul.f32 %v1639, %v1639
  %v2190 = vmul.f32 %v1640, %v1640
  %v2191 = vmul.f32 %v1641, %v1641
  %v2192 = vmul.f32 %v1642, %v1642
  %v2193 = vmul.f32 %v1643, %v1643
  %v2194 = vmul.f32 %v1644, %v1644
  %v2195 = vmul.f32 %v1645, %v1645
  %v2196 = vmul.f32 %v1646, %v1646
  %v2197 = vmul.f32 %v1647, %v1647
  %v2198 = vmul.f32 %v1648, %v1648
  %v2199 = vmul.f32 %v1649, %v1649
  %v2200 = vmul.f32 %v1650, %v1650
  %v2201 = vmul.f32 %v1651, %v1651
  %v2202 = vmul.f32 %v1652, %v1652
  %v2203 = vmul.f32 %v1653, %v1653
  %v2204 = vmul.f32 %v1654, %v1654
  %v2205 = vmul.f32 %v1655, %v1655
  %v2206 = vmul.f32 %v1656, %v1656
  %v2207 = vmul.f32 %v1657, %v1657
  %v2208 = vmul.f32 %v1658, %v1658
  %v2209 = vmul.f32 %v1659, %v1659
  %v2210 = vmul.f32 %v1660, %v1660
  %v2211 = vmul.f32 %v1661, %v1661
  %v2212 = vmul.f32 %v1662, %v1662
  %v2213 = vmul.f32 %v1663, %v1663
  %v2214 = vmul.f32 %v1664, %v1664
  %v2215 = vmul.f32 %v1665, %v1665
  %v2216 = vmul.f32 %v1666, %v1666
  %v2217 = vmul.f32 %v1667, %v1667
  %v2218 = vmul.f32 %v1668, %v1668
  %v2219 = vmul.f32 %v1669, %v1669
  %v2220 = vmul.f32 %v1670, %v1670
  %v2221 = vmul.f32 %v1671, %v1671
  %v2222 = vmul.f32 %v1672, %v1672
  %v2223 = vmul.f32 %v1673, %v1673
  %v2224 = vmul.f32 %v1674, %v1674
  %v2225 = vmul.f32 %v1675, %v1675
  %v2226 = vmul.f32 %v1676, %v1676
  %v2227 = vmul.f32 %v1677, %v1677
  %v2228 = vmul.f32 %v1678, %v1678
  %v2229 = vmul.f32 %v1679, %v1679
  %v2230 = vmul.f32 %v1680, %v1680
  %v2231 = vmul.f32 %v1681, %v1681
  %v2232 = vmul.f32 %v1682, %v1682
  %v2233 = vmul.f32 %v1683, %v1683
  %v2234 = vmul.f32 %v1684, %v1684
  %v2235 = vmul.f32 %v1685, %v1685
  %v2236 = vmul.f32 %v1686, %v1686
  %v2237 = vmul.f32 %v1687, %v1687
  %v2238 = vmul.f32 %v1688, %v1688
  %v2239 = vmul.f32 %v1689, %v1689
  %v2240 = vmul.f32 %v1690, %v1690
  %v2241 = vmul.f32 %v1691, %v1691
  %v2242 = vmul.f32 %v1692, %v1692
  %v2243 = vmul.f32 %v1693, %v1693
  %v2244 = vmul.f32 %v1694, %v1694
  %v2245 = vmul.f32 %v1695, %v1695
  %v2246 = vmul.f32 %v1696, %v1696
  %v2247 = vmul.f32 %v1697, %v1697
  %v2248 = vmul.f32 %v1698, %v1698
  %v2249 = vmul.f32 %v1699, %v1699
  %v2250 = vmul.f32 %v1700, %v1700
  %v2251 = vmul.f32 %v1701, %v1701
  %v2252 = vmul.f32 %v1702, %v1702
  %v2253 = vmul.f32 %v1703, %v1703
  %v2254 = vmul.f32 %v1704, %v1704
  %v2255 = vmul.f32 %v1705, %v1705
  %v2256 = vmul.f32 %v1706, %v1706
  %v2257 = vmul.f32 %v1707, %v1707
  %v2258 = vmul.f32 %v1708, %v1708
  %v2259 = vmul.f32 %v1709, %v1709
  %v2260 = vmul.f32 %v1710, %v1710
  %v2261 = vmul.f32 %v1711, %v1711
  %v2262 = vmul.f32 %v1712, %v1712
  %v2263 = vmul.f32 %v1713, %v1713
  %v2360 = vrot.slane %v2168, 7
  %v2361 = vrot.slane %v2169, 7
  %v2362 = vsel %vm1810, %v2360, %v2361
  %v2363 = vrot.slane %v2170, 7
  %v2364 = vsel %vm1810, %v2361, %v2363
  %v2365 = vrot.slane %v2171, 7
  %v2366 = vrot.slane %v2172, 7
  %v2367 = vsel %vm1810, %v2365, %v2366
  %v2368 = vrot.slane %v2173, 7
  %v2369 = vsel %vm1810, %v2366, %v2368
  %v2370 = vrot.slane %v2174, 7
  %v2371 = vrot.slane %v2175, 7
  %v2372 = vsel %vm1810, %v2370, %v2371
  %v2373 = vrot.slane %v2176, 7
  %v2374 = vsel %vm1810, %v2371, %v2373
  %v2375 = vrot.slane %v2177, 7
  %v2376 = vrot.slane %v2178, 7
  %v2377 = vsel %vm1810, %v2375, %v2376
  %v2378 = vrot.slane %v2179, 7
  %v2379 = vsel %vm1810, %v2376, %v2378
  %v2380 = vrot.slane %v2180, 7
  %v2381 = vrot.slane %v2181, 7
  %v2382 = vsel %vm1810, %v2380, %v2381
  %v2383 = vrot.slane %v2182, 7
  %v2384 = vsel %vm1810, %v2381, %v2383
  %v2385 = vrot.slane %v2183, 7
  %v2386 = vrot.slane %v2184, 7
  %v2387 = vsel %vm1810, %v2385, %v2386
  %v2388 = vrot.slane %v2185, 7
  %v2389 = vsel %vm1810, %v2386, %v2388
  %v2390 = vrot.slane %v2186, 7
  %v2391 = vrot.slane %v2187, 7
  %v2392 = vsel %vm1810, %v2390, %v2391
  %v2393 = vrot.slane %v2188, 7
  %v2394 = vsel %vm1810, %v2391, %v2393
  %v2395 = vrot.slane %v2189, 7
  %v2396 = vrot.slane %v2190, 7
  %v2397 = vsel %vm1810, %v2395, %v2396
  %v2398 = vrot.slane %v2191, 7
  %v2399 = vsel %vm1810, %v2396, %v2398
  %v2400 = vrot.slane %v2192, 7
  %v2401 = vrot.slane %v2193, 7
  %v2402 = vsel %vm1810, %v2400, %v2401
  %v2403 = vrot.slane %v2194, 7
  %v2404 = vsel %vm1810, %v2401, %v2403
  %v2405 = vrot.slane %v2195, 7
  %v2406 = vrot.slane %v2196, 7
  %v2407 = vsel %vm1810, %v2405, %v2406
  %v2408 = vrot.slane %v2197, 7
  %v2409 = vsel %vm1810, %v2406, %v2408
  %v2410 = vrot.slane %v2198, 7
  %v2411 = vrot.slane %v2199, 7
  %v2412 = vsel %vm1810, %v2410, %v2411
  %v2413 = vrot.slane %v2200, 7
  %v2414 = vsel %vm1810, %v2411, %v2413
  %v2415 = vrot.slane %v2201, 7
  %v2416 = vrot.slane %v2202, 7
  %v2417 = vsel %vm1810, %v2415, %v2416
  %v2418 = vrot.slane %v2203, 7
  %v2419 = vsel %vm1810, %v2416, %v2418
  %v2420 = vrot.slane %v2204, 7
  %v2421 = vrot.slane %v2205, 7
  %v2422 = vsel %vm1810, %v2420, %v2421
  %v2423 = vrot.slane %v2206, 7
  %v2424 = vsel %vm1810, %v2421, %v2423
  %v2425 = vrot.slane %v2207, 7
  %v2426 = vrot.slane %v2208, 7
  %v2427 = vsel %vm1810, %v2425, %v2426
  %v2428 = vrot.slane %v2209, 7
  %v2429 = vsel %vm1810, %v2426, %v2428
  %v2430 = vrot.slane %v2210, 7
  %v2431 = vrot.slane %v2211, 7
  %v2432 = vsel %vm1810, %v2430, %v2431
  %v2433 = vrot.slane %v2212, 7
  %v2434 = vsel %vm1810, %v2431, %v2433
  %v2435 = vrot.slane %v2213, 7
  %v2436 = vrot.slane %v2214, 7
  %v2437 = vsel %vm1810, %v2435, %v2436
  %v2438 = vrot.slane %v2215, 7
  %v2439 = vsel %vm1810, %v2436, %v2438
  %v2440 = vrot.slane %v2216, 7
  %v2441 = vrot.slane %v2217, 7
  %v2442 = vsel %vm1810, %v2440, %v2441
  %v2443 = vrot.slane %v2218, 7
  %v2444 = vsel %vm1810, %v2441, %v2443
  %v2445 = vrot.slane %v2219, 7
  %v2446 = vrot.slane %v2220, 7
  %v2447 = vsel %vm1810, %v2445, %v2446
  %v2448 = vrot.slane %v2221, 7
  %v2449 = vsel %vm1810, %v2446, %v2448
  %v2450 = vrot.slane %v2222, 7
  %v2451 = vrot.slane %v2223, 7
  %v2452 = vsel %vm1810, %v2450, %v2451
  %v2453 = vrot.slane %v2224, 7
  %v2454 = vsel %vm1810, %v2451, %v2453
  %v2455 = vrot.slane %v2225, 7
  %v2456 = vrot.slane %v2226, 7
  %v2457 = vsel %vm1810, %v2455, %v2456
  %v2458 = vrot.slane %v2227, 7
  %v2459 = vsel %vm1810, %v2456, %v2458
  %v2460 = vrot.slane %v2228, 7
  %v2461 = vrot.slane %v2229, 7
  %v2462 = vsel %vm1810, %v2460, %v2461
  %v2463 = vrot.slane %v2230, 7
  %v2464 = vsel %vm1810, %v2461, %v2463
  %v2465 = vrot.slane %v2231, 7
  %v2466 = vrot.slane %v2232, 7
  %v2467 = vsel %vm1810, %v2465, %v2466
  %v2468 = vrot.slane %v2233, 7
  %v2469 = vsel %vm1810, %v2466, %v2468
  %v2470 = vrot.slane %v2234, 7
  %v2471 = vrot.slane %v2235, 7
  %v2472 = vsel %vm1810, %v2470, %v2471
  %v2473 = vrot.slane %v2236, 7
  %v2474 = vsel %vm1810, %v2471, %v2473
  %v2475 = vrot.slane %v2237, 7
  %v2476 = vrot.slane %v2238, 7
  %v2477 = vsel %vm1810, %v2475, %v2476
  %v2478 = vrot.slane %v2239, 7
  %v2479 = vsel %vm1810, %v2476, %v2478
  %v2480 = vrot.slane %v2240, 7
  %v2481 = vrot.slane %v2241, 7
  %v2482 = vsel %vm1810, %v2480, %v2481
  %v2483 = vrot.slane %v2242, 7
  %v2484 = vsel %vm1810, %v2481, %v2483
  %v2485 = vrot.slane %v2243, 7
  %v2486 = vrot.slane %v2244, 7
  %v2487 = vsel %vm1810, %v2485, %v2486
  %v2488 = vrot.slane %v2245, 7
  %v2489 = vsel %vm1810, %v2486, %v2488
  %v2490 = vrot.slane %v2246, 7
  %v2491 = vrot.slane %v2247, 7
  %v2492 = vsel %vm1810, %v2490, %v2491
  %v2493 = vrot.slane %v2248, 7
  %v2494 = vsel %vm1810, %v2491, %v2493
  %v2495 = vrot.slane %v2249, 7
  %v2496 = vrot.slane %v2250, 7
  %v2497 = vsel %vm1810, %v2495, %v2496
  %v2498 = vrot.slane %v2251, 7
  %v2499 = vsel %vm1810, %v2496, %v2498
  %v2500 = vrot.slane %v2252, 7
  %v2501 = vrot.slane %v2253, 7
  %v2502 = vsel %vm1810, %v2500, %v2501
  %v2503 = vrot.slane %v2254, 7
  %v2504 = vsel %vm1810, %v2501, %v2503
  %v2505 = vrot.slane %v2255, 7
  %v2506 = vrot.slane %v2256, 7
  %v2507 = vsel %vm1810, %v2505, %v2506
  %v2508 = vrot.slane %v2257, 7
  %v2509 = vsel %vm1810, %v2506, %v2508
  %v2510 = vrot.slane %v2258, 7
  %v2511 = vrot.slane %v2259, 7
  %v2512 = vsel %vm1810, %v2510, %v2511
  %v2513 = vrot.slane %v2260, 7
  %v2514 = vsel %vm1810, %v2511, %v2513
  %v2515 = vrot.slane %v2261, 7
  %v2516 = vrot.slane %v2262, 7
  %v2517 = vsel %vm1810, %v2515, %v2516
  %v2518 = vrot.slane %v2263, 7
  %v2519 = vsel %vm1810, %v2516, %v2518
  %v2584 = vsel %vm17, %v2362, 0.0
  %v2585 = vsel %vm17, %v2364, 0.0
  %v2586 = vadd.f32 %v2584, %v2585
  %v2587 = vsel %vm17, %v2367, 0.0
  %v2588 = vadd.f32 %v2586, %v2587
  %v2589 = vsel %vm17, %v2369, 0.0
  %v2590 = vadd.f32 %v2588, %v2589
  %v2591 = vsel %vm17, %v2372, 0.0
  %v2592 = vadd.f32 %v2590, %v2591
  %v2593 = vsel %vm17, %v2374, 0.0
  %v2594 = vadd.f32 %v2592, %v2593
  %v2595 = vsel %vm17, %v2377, 0.0
  %v2596 = vadd.f32 %v2594, %v2595
  %v2597 = vsel %vm17, %v2379, 0.0
  %v2598 = vadd.f32 %v2596, %v2597
  %v2599 = vsel %vm17, %v2382, 0.0
  %v2600 = vadd.f32 %v2598, %v2599
  %v2601 = vsel %vm17, %v2384, 0.0
  %v2602 = vadd.f32 %v2600, %v2601
  %v2603 = vsel %vm17, %v2387, 0.0
  %v2604 = vadd.f32 %v2602, %v2603
  %v2605 = vsel %vm17, %v2389, 0.0
  %v2606 = vadd.f32 %v2604, %v2605
  %v2607 = vsel %vm17, %v2392, 0.0
  %v2608 = vadd.f32 %v2606, %v2607
  %v2609 = vsel %vm17, %v2394, 0.0
  %v2610 = vadd.f32 %v2608, %v2609
  %v2611 = vsel %vm17, %v2397, 0.0
  %v2612 = vadd.f32 %v2610, %v2611
  %v2613 = vsel %vm17, %v2399, 0.0
  %v2614 = vadd.f32 %v2612, %v2613
  %v2615 = vsel %vm17, %v2402, 0.0
  %v2616 = vadd.f32 %v2614, %v2615
  %v2617 = vsel %vm17, %v2404, 0.0
  %v2618 = vadd.f32 %v2616, %v2617
  %v2619 = vsel %vm17, %v2407, 0.0
  %v2620 = vadd.f32 %v2618, %v2619
  %v2621 = vsel %vm17, %v2409, 0.0
  %v2622 = vadd.f32 %v2620, %v2621
  %v2623 = vsel %vm17, %v2412, 0.0
  %v2624 = vadd.f32 %v2622, %v2623
  %v2625 = vsel %vm17, %v2414, 0.0
  %v2626 = vadd.f32 %v2624, %v2625
  %v2627 = vsel %vm17, %v2417, 0.0
  %v2628 = vadd.f32 %v2626, %v2627
  %v2629 = vsel %vm17, %v2419, 0.0
  %v2630 = vadd.f32 %v2628, %v2629
  %v2631 = vsel %vm17, %v2422, 0.0
  %v2632 = vadd.f32 %v2630, %v2631
  %v2633 = vsel %vm17, %v2424, 0.0
  %v2634 = vadd.f32 %v2632, %v2633
  %v2635 = vsel %vm17, %v2427, 0.0
  %v2636 = vadd.f32 %v2634, %v2635
  %v2637 = vsel %vm17, %v2429, 0.0
  %v2638 = vadd.f32 %v2636, %v2637
  %v2639 = vsel %vm17, %v2432, 0.0
  %v2640 = vadd.f32 %v2638, %v2639
  %v2641 = vsel %vm17, %v2434, 0.0
  %v2642 = vadd.f32 %v2640, %v2641
  %v2643 = vsel %vm17, %v2437, 0.0
  %v2644 = vadd.f32 %v2642, %v2643
  %v2645 = vsel %vm17, %v2439, 0.0
  %v2646 = vadd.f32 %v2644, %v2645
  %v2647 = vsel %vm17, %v2442, 0.0
  %v2648 = vadd.f32 %v2646, %v2647
  %v2649 = vsel %vm17, %v2444, 0.0
  %v2650 = vadd.f32 %v2648, %v2649
  %v2651 = vsel %vm17, %v2447, 0.0
  %v2652 = vadd.f32 %v2650, %v2651
  %v2653 = vsel %vm17, %v2449, 0.0
  %v2654 = vadd.f32 %v2652, %v2653
  %v2655 = vsel %vm17, %v2452, 0.0
  %v2656 = vadd.f32 %v2654, %v2655
  %v2657 = vsel %vm17, %v2454, 0.0
  %v2658 = vadd.f32 %v2656, %v2657
  %v2659 = vsel %vm17, %v2457, 0.0
  %v2660 = vadd.f32 %v2658, %v2659
  %v2661 = vsel %vm17, %v2459, 0.0
  %v2662 = vadd.f32 %v2660, %v2661
  %v2663 = vsel %vm17, %v2462, 0.0
  %v2664 = vadd.f32 %v2662, %v2663
  %v2665 = vsel %vm17, %v2464, 0.0
  %v2666 = vadd.f32 %v2664, %v2665
  %v2667 = vsel %vm17, %v2467, 0.0
  %v2668 = vadd.f32 %v2666, %v2667
  %v2669 = vsel %vm17, %v2469, 0.0
  %v2670 = vadd.f32 %v2668, %v2669
  %v2671 = vsel %vm17, %v2472, 0.0
  %v2672 = vadd.f32 %v2670, %v2671
  %v2673 = vsel %vm17, %v2474, 0.0
  %v2674 = vadd.f32 %v2672, %v2673
  %v2675 = vsel %vm17, %v2477, 0.0
  %v2676 = vadd.f32 %v2674, %v2675
  %v2677 = vsel %vm17, %v2479, 0.0
  %v2678 = vadd.f32 %v2676, %v2677
  %v2679 = vsel %vm17, %v2482, 0.0
  %v2680 = vadd.f32 %v2678, %v2679
  %v2681 = vsel %vm17, %v2484, 0.0
  %v2682 = vadd.f32 %v2680, %v2681
  %v2683 = vsel %vm17, %v2487, 0.0
  %v2684 = vadd.f32 %v2682, %v2683
  %v2685 = vsel %vm17, %v2489, 0.0
  %v2686 = vadd.f32 %v2684, %v2685
  %v2687 = vsel %vm17, %v2492, 0.0
  %v2688 = vadd.f32 %v2686, %v2687
  %v2689 = vsel %vm17, %v2494, 0.0
  %v2690 = vadd.f32 %v2688, %v2689
  %v2691 = vsel %vm17, %v2497, 0.0
  %v2692 = vadd.f32 %v2690, %v2691
  %v2693 = vsel %vm17, %v2499, 0.0
  %v2694 = vadd.f32 %v2692, %v2693
  %v2695 = vsel %vm17, %v2502, 0.0
  %v2696 = vadd.f32 %v2694, %v2695
  %v2697 = vsel %vm17, %v2504, 0.0
  %v2698 = vadd.f32 %v2696, %v2697
  %v2699 = vsel %vm17, %v2507, 0.0
  %v2700 = vadd.f32 %v2698, %v2699
  %v2701 = vsel %vm17, %v2509, 0.0
  %v2702 = vadd.f32 %v2700, %v2701
  %v2703 = vsel %vm17, %v2512, 0.0
  %v2704 = vadd.f32 %v2702, %v2703
  %v2705 = vsel %vm17, %v2514, 0.0
  %v2706 = vadd.f32 %v2704, %v2705
  %v2707 = vsel %vm17, %v2517, 0.0
  %v2708 = vadd.f32 %v2706, %v2707
  %v2709 = vsel %vm17, %v2519, 0.0
  %v2710 = vadd.f32 %v2708, %v2709
  %v2711 = vrot.slane %v2710, 4
  %v2712 = vadd.f32 %v2710, %v2711
  %v2713 = vrot.slane %v2712, 2
  %v2714 = vadd.f32 %v2712, %v2713
  %v2715 = vrot.slane %v2714, 1
  %v2716 = vadd.f32 %v2714, %v2715
  %v2717 = vmul.f32 %v2167, 0.001953125
  %v2718 = vmul.f32 %v2716, 0.001953125
  %v2719 = vmul.f32 %v2717, %v2717
  %v2720 = vsub.f32 %v2718, %v2719
  %v2721 = vmax.f32 %v2720, 0.0
  %v2722 = vld [vmem:[%s2] sm:$0x1]
  %v2723 = vadd.f32 %v2721, 1e-05
  %v2724 = vrsqrt.pop %v2723
  %v2725 = vmul.f32 %v2722, %v2724
  %v2726 = vld [vmem:[%s3] sm:$0x1]
  %v2727 = vmul.f32 %v2717, %v2725
  %v2728 = vsub.f32 %v2726, %v2727
  %v2730 = vlaneseq
  %v2731 = vshrl.u32 %v2730, 7
  %v2732 = vsub.s32 0, %v2731
  %v2733 = vrot.slane %v2725, %v2732
  %v2735 = vmul.f32 %v1618, %v2733
  %v2736 = vmul.f32 %v1619, %v2733
  %v2737 = vmul.f32 %v1620, %v2733
  %v2738 = vmul.f32 %v1621, %v2733
  %v2739 = vmul.f32 %v1622, %v2733
  %v2740 = vmul.f32 %v1623, %v2733
  %v2741 = vmul.f32 %v1624, %v2733
  %v2742 = vmul.f32 %v1625, %v2733
  %v2743 = vmul.f32 %v1626, %v2733
  %v2744 = vmul.f32 %v1627, %v2733
  %v2745 = vmul.f32 %v1628, %v2733
  %v2746 = vmul.f32 %v1629, %v2733
  %v2747 = vmul.f32 %v1630, %v2733
  %v2748 = vmul.f32 %v1631, %v2733
  %v2749 = vmul.f32 %v1632, %v2733
  %v2750 = vmul.f32 %v1633, %v2733
  %v2751 = vmul.f32 %v1634, %v2733
  %v2752 = vmul.f32 %v1635, %v2733
  %v2753 = vmul.f32 %v1636, %v2733
  %v2754 = vmul.f32 %v1637, %v2733
  %v2755 = vmul.f32 %v1638, %v2733
  %v2756 = vmul.f32 %v1639, %v2733
  %v2757 = vmul.f32 %v1640, %v2733
  %v2758 = vmul.f32 %v1641, %v2733
  %v2759 = vmul.f32 %v1642, %v2733
  %v2760 = vmul.f32 %v1643, %v2733
  %v2761 = vmul.f32 %v1644, %v2733
  %v2762 = vmul.f32 %v1645, %v2733
  %v2763 = vmul.f32 %v1646, %v2733
  %v2764 = vmul.f32 %v1647, %v2733
  %v2765 = vmul.f32 %v1648, %v2733
  %v2766 = vmul.f32 %v1649, %v2733
  %v2767 = vmul.f32 %v1650, %v2733
  %v2768 = vmul.f32 %v1651, %v2733
  %v2769 = vmul.f32 %v1652, %v2733
  %v2770 = vmul.f32 %v1653, %v2733
  %v2771 = vmul.f32 %v1654, %v2733
  %v2772 = vmul.f32 %v1655, %v2733
  %v2773 = vmul.f32 %v1656, %v2733
  %v2774 = vmul.f32 %v1657, %v2733
  %v2775 = vmul.f32 %v1658, %v2733
  %v2776 = vmul.f32 %v1659, %v2733
  %v2777 = vmul.f32 %v1660, %v2733
  %v2778 = vmul.f32 %v1661, %v2733
  %v2779 = vmul.f32 %v1662, %v2733
  %v2780 = vmul.f32 %v1663, %v2733
  %v2781 = vmul.f32 %v1664, %v2733
  %v2782 = vmul.f32 %v1665, %v2733
  %v2783 = vmul.f32 %v1666, %v2733
  %v2784 = vmul.f32 %v1667, %v2733
  %v2785 = vmul.f32 %v1668, %v2733
  %v2786 = vmul.f32 %v1669, %v2733
  %v2787 = vmul.f32 %v1670, %v2733
  %v2788 = vmul.f32 %v1671, %v2733
  %v2789 = vmul.f32 %v1672, %v2733
  %v2790 = vmul.f32 %v1673, %v2733
  %v2791 = vmul.f32 %v1674, %v2733
  %v2792 = vmul.f32 %v1675, %v2733
  %v2793 = vmul.f32 %v1676, %v2733
  %v2794 = vmul.f32 %v1677, %v2733
  %v2795 = vmul.f32 %v1678, %v2733
  %v2796 = vmul.f32 %v1679, %v2733
  %v2797 = vmul.f32 %v1680, %v2733
  %v2798 = vmul.f32 %v1681, %v2733
  %v2799 = vmul.f32 %v1682, %v2733
  %v2800 = vmul.f32 %v1683, %v2733
  %v2801 = vmul.f32 %v1684, %v2733
  %v2802 = vmul.f32 %v1685, %v2733
  %v2803 = vmul.f32 %v1686, %v2733
  %v2804 = vmul.f32 %v1687, %v2733
  %v2805 = vmul.f32 %v1688, %v2733
  %v2806 = vmul.f32 %v1689, %v2733
  %v2807 = vmul.f32 %v1690, %v2733
  %v2808 = vmul.f32 %v1691, %v2733
  %v2809 = vmul.f32 %v1692, %v2733
  %v2810 = vmul.f32 %v1693, %v2733
  %v2811 = vmul.f32 %v1694, %v2733
  %v2812 = vmul.f32 %v1695, %v2733
  %v2813 = vmul.f32 %v1696, %v2733
  %v2814 = vmul.f32 %v1697, %v2733
  %v2815 = vmul.f32 %v1698, %v2733
  %v2816 = vmul.f32 %v1699, %v2733
  %v2817 = vmul.f32 %v1700, %v2733
  %v2818 = vmul.f32 %v1701, %v2733
  %v2819 = vmul.f32 %v1702, %v2733
  %v2820 = vmul.f32 %v1703, %v2733
  %v2821 = vmul.f32 %v1704, %v2733
  %v2822 = vmul.f32 %v1705, %v2733
  %v2823 = vmul.f32 %v1706, %v2733
  %v2824 = vmul.f32 %v1707, %v2733
  %v2825 = vmul.f32 %v1708, %v2733
  %v2826 = vmul.f32 %v1709, %v2733
  %v2827 = vmul.f32 %v1710, %v2733
  %v2828 = vmul.f32 %v1711, %v2733
  %v2829 = vmul.f32 %v1712, %v2733
  %v2830 = vmul.f32 %v1713, %v2733
  %v2832 = vlaneseq
  %v2833 = vshrl.u32 %v2832, 7
  %v2834 = vsub.s32 0, %v2833
  %v2835 = vrot.slane %v2728, %v2834
  %v2837 = vadd.f32 %v2735, %v2835
  %v2838 = vadd.f32 %v2736, %v2835
  %v2839 = vadd.f32 %v2737, %v2835
  %v2840 = vadd.f32 %v2738, %v2835
  %v2841 = vadd.f32 %v2739, %v2835
  %v2842 = vadd.f32 %v2740, %v2835
  %v2843 = vadd.f32 %v2741, %v2835
  %v2844 = vadd.f32 %v2742, %v2835
  %v2845 = vadd.f32 %v2743, %v2835
  %v2846 = vadd.f32 %v2744, %v2835
  %v2847 = vadd.f32 %v2745, %v2835
  %v2848 = vadd.f32 %v2746, %v2835
  %v2849 = vadd.f32 %v2747, %v2835
  %v2850 = vadd.f32 %v2748, %v2835
  %v2851 = vadd.f32 %v2749, %v2835
  %v2852 = vadd.f32 %v2750, %v2835
  %v2853 = vadd.f32 %v2751, %v2835
  %v2854 = vadd.f32 %v2752, %v2835
  %v2855 = vadd.f32 %v2753, %v2835
  %v2856 = vadd.f32 %v2754, %v2835
  %v2857 = vadd.f32 %v2755, %v2835
  %v2858 = vadd.f32 %v2756, %v2835
  %v2859 = vadd.f32 %v2757, %v2835
  %v2860 = vadd.f32 %v2758, %v2835
  %v2861 = vadd.f32 %v2759, %v2835
  %v2862 = vadd.f32 %v2760, %v2835
  %v2863 = vadd.f32 %v2761, %v2835
  %v2864 = vadd.f32 %v2762, %v2835
  %v2865 = vadd.f32 %v2763, %v2835
  %v2866 = vadd.f32 %v2764, %v2835
  %v2867 = vadd.f32 %v2765, %v2835
  %v2868 = vadd.f32 %v2766, %v2835
  %v2869 = vadd.f32 %v2767, %v2835
  %v2870 = vadd.f32 %v2768, %v2835
  %v2871 = vadd.f32 %v2769, %v2835
  %v2872 = vadd.f32 %v2770, %v2835
  %v2873 = vadd.f32 %v2771, %v2835
  %v2874 = vadd.f32 %v2772, %v2835
  %v2875 = vadd.f32 %v2773, %v2835
  %v2876 = vadd.f32 %v2774, %v2835
  %v2877 = vadd.f32 %v2775, %v2835
  %v2878 = vadd.f32 %v2776, %v2835
  %v2879 = vadd.f32 %v2777, %v2835
  %v2880 = vadd.f32 %v2778, %v2835
  %v2881 = vadd.f32 %v2779, %v2835
  %v2882 = vadd.f32 %v2780, %v2835
  %v2883 = vadd.f32 %v2781, %v2835
  %v2884 = vadd.f32 %v2782, %v2835
  %v2885 = vadd.f32 %v2783, %v2835
  %v2886 = vadd.f32 %v2784, %v2835
  %v2887 = vadd.f32 %v2785, %v2835
  %v2888 = vadd.f32 %v2786, %v2835
  %v2889 = vadd.f32 %v2787, %v2835
  %v2890 = vadd.f32 %v2788, %v2835
  %v2891 = vadd.f32 %v2789, %v2835
  %v2892 = vadd.f32 %v2790, %v2835
  %v2893 = vadd.f32 %v2791, %v2835
  %v2894 = vadd.f32 %v2792, %v2835
  %v2895 = vadd.f32 %v2793, %v2835
  %v2896 = vadd.f32 %v2794, %v2835
  %v2897 = vadd.f32 %v2795, %v2835
  %v2898 = vadd.f32 %v2796, %v2835
  %v2899 = vadd.f32 %v2797, %v2835
  %v2900 = vadd.f32 %v2798, %v2835
  %v2901 = vadd.f32 %v2799, %v2835
  %v2902 = vadd.f32 %v2800, %v2835
  %v2903 = vadd.f32 %v2801, %v2835
  %v2904 = vadd.f32 %v2802, %v2835
  %v2905 = vadd.f32 %v2803, %v2835
  %v2906 = vadd.f32 %v2804, %v2835
  %v2907 = vadd.f32 %v2805, %v2835
  %v2908 = vadd.f32 %v2806, %v2835
  %v2909 = vadd.f32 %v2807, %v2835
  %v2910 = vadd.f32 %v2808, %v2835
  %v2911 = vadd.f32 %v2809, %v2835
  %v2912 = vadd.f32 %v2810, %v2835
  %v2913 = vadd.f32 %v2811, %v2835
  %v2914 = vadd.f32 %v2812, %v2835
  %v2915 = vadd.f32 %v2813, %v2835
  %v2916 = vadd.f32 %v2814, %v2835
  %v2917 = vadd.f32 %v2815, %v2835
  %v2918 = vadd.f32 %v2816, %v2835
  %v2919 = vadd.f32 %v2817, %v2835
  %v2920 = vadd.f32 %v2818, %v2835
  %v2921 = vadd.f32 %v2819, %v2835
  %v2922 = vadd.f32 %v2820, %v2835
  %v2923 = vadd.f32 %v2821, %v2835
  %v2924 = vadd.f32 %v2822, %v2835
  %v2925 = vadd.f32 %v2823, %v2835
  %v2926 = vadd.f32 %v2824, %v2835
  %v2927 = vadd.f32 %v2825, %v2835
  %v2928 = vadd.f32 %v2826, %v2835
  %v2929 = vadd.f32 %v2827, %v2835
  %v2930 = vadd.f32 %v2828, %v2835
  %v2931 = vadd.f32 %v2829, %v2835
  %v2932 = vadd.f32 %v2830, %v2835
  %vm2933 = vcmask 31751
  %2934 = vst.msk [vmem:[%s4 - $0x7] sm:$0x80] %vm2933, %v2837
  %2935 = vst.msk [vmem:[%s4 + $0x1] sm:$0xff] %vm17, %v2838
  %vm2936 = vcmask 30720
  %2937 = vst.msk [vmem:[%s4 + $0x9] sm:$0x7f] %vm2936, %v2839
  %2938 = vst.msk [vmem:[%s4 + $0x9] sm:$0x80] %vm2933, %v2840
  %2939 = vst.msk [vmem:[%s4 + $0x11] sm:$0xff] %vm17, %v2841
  %2940 = vst.msk [vmem:[%s4 + $0x19] sm:$0x7f] %vm2936, %v2842
  %2941 = vst.msk [vmem:[%s4 + $0x19] sm:$0x80] %vm2933, %v2843
  %2942 = vst.msk [vmem:[%s4 + $0x21] sm:$0xff] %vm17, %v2844
  %2943 = vst.msk [vmem:[%s4 + $0x29] sm:$0x7f] %vm2936, %v2845
  %2944 = vst.msk [vmem:[%s4 + $0x29] sm:$0x80] %vm2933, %v2846
  %2945 = vst.msk [vmem:[%s4 + $0x31] sm:$0xff] %vm17, %v2847
  %2946 = vst.msk [vmem:[%s4 + $0x39] sm:$0x7f] %vm2936, %v2848
  %2947 = vst.msk [vmem:[%s4 + $0x39] sm:$0x80] %vm2933, %v2849
  %2948 = vst.msk [vmem:[%s4 + $0x41] sm:$0xff] %vm17, %v2850
  %2949 = vst.msk [vmem:[%s4 + $0x49] sm:$0x7f] %vm2936, %v2851
  %2950 = vst.msk [vmem:[%s4 + $0x49] sm:$0x80] %vm2933, %v2852
  %2951 = vst.msk [vmem:[%s4 + $0x51] sm:$0xff] %vm17, %v2853
  %2952 = vst.msk [vmem:[%s4 + $0x59] sm:$0x7f] %vm2936, %v2854
  %2953 = vst.msk [vmem:[%s4 + $0x59] sm:$0x80] %vm2933, %v2855
  %2954 = vst.msk [vmem:[%s4 + $0x61] sm:$0xff] %vm17, %v2856
  %2955 = vst.msk [vmem:[%s4 + $0x69] sm:$0x7f] %vm2936, %v2857
  %2956 = vst.msk [vmem:[%s4 + $0x69] sm:$0x80] %vm2933, %v2858
  %2957 = vst.msk [vmem:[%s4 + $0x71] sm:$0xff] %vm17, %v2859
  %2958 = vst.msk [vmem:[%s4 + $0x79] sm:$0x7f] %vm2936, %v2860
  %2959 = vst.msk [vmem:[%s4 + $0x79] sm:$0x80] %vm2933, %v2861
  %2960 = vst.msk [vmem:[%s4 + $0x81] sm:$0xff] %vm17, %v2862
  %2961 = vst.msk [vmem:[%s4 + $0x89] sm:$0x7f] %vm2936, %v2863
  %2962 = vst.msk [vmem:[%s4 + $0x89] sm:$0x80] %vm2933, %v2864
  %2963 = vst.msk [vmem:[%s4 + $0x91] sm:$0xff] %vm17, %v2865
  %2964 = vst.msk [vmem:[%s4 + $0x99] sm:$0x7f] %vm2936, %v2866
  %2965 = vst.msk [vmem:[%s4 + $0x99] sm:$0x80] %vm2933, %v2867
  %2966 = vst.msk [vmem:[%s4 + $0xa1] sm:$0xff] %vm17, %v2868
  %2967 = vst.msk [vmem:[%s4 + $0xa9] sm:$0x7f] %vm2936, %v2869
  %2968 = vst.msk [vmem:[%s4 + $0xa9] sm:$0x80] %vm2933, %v2870
  %2969 = vst.msk [vmem:[%s4 + $0xb1] sm:$0xff] %vm17, %v2871
  %2970 = vst.msk [vmem:[%s4 + $0xb9] sm:$0x7f] %vm2936, %v2872
  %2971 = vst.msk [vmem:[%s4 + $0xb9] sm:$0x80] %vm2933, %v2873
  %2972 = vst.msk [vmem:[%s4 + $0xc1] sm:$0xff] %vm17, %v2874
  %2973 = vst.msk [vmem:[%s4 + $0xc9] sm:$0x7f] %vm2936, %v2875
  %2974 = vst.msk [vmem:[%s4 + $0xc9] sm:$0x80] %vm2933, %v2876
  %2975 = vst.msk [vmem:[%s4 + $0xd1] sm:$0xff] %vm17, %v2877
  %2976 = vst.msk [vmem:[%s4 + $0xd9] sm:$0x7f] %vm2936, %v2878
  %2977 = vst.msk [vmem:[%s4 + $0xd9] sm:$0x80] %vm2933, %v2879
  %2978 = vst.msk [vmem:[%s4 + $0xe1] sm:$0xff] %vm17, %v2880
  %2979 = vst.msk [vmem:[%s4 + $0xe9] sm:$0x7f] %vm2936, %v2881
  %2980 = vst.msk [vmem:[%s4 + $0xe9] sm:$0x80] %vm2933, %v2882
  %2981 = vst.msk [vmem:[%s4 + $0xf1] sm:$0xff] %vm17, %v2883
  %2982 = vst.msk [vmem:[%s4 + $0xf9] sm:$0x7f] %vm2936, %v2884
  %2983 = vst.msk [vmem:[%s4 + $0xf9] sm:$0x80] %vm2933, %v2885
  %2984 = vst.msk [vmem:[%s4 + $0x101] sm:$0xff] %vm17, %v2886
  %2985 = vst.msk [vmem:[%s4 + $0x109] sm:$0x7f] %vm2936, %v2887
  %2986 = vst.msk [vmem:[%s4 + $0x109] sm:$0x80] %vm2933, %v2888
  %2987 = vst.msk [vmem:[%s4 + $0x111] sm:$0xff] %vm17, %v2889
  %2988 = vst.msk [vmem:[%s4 + $0x119] sm:$0x7f] %vm2936, %v2890
  %2989 = vst.msk [vmem:[%s4 + $0x119] sm:$0x80] %vm2933, %v2891
  %2990 = vst.msk [vmem:[%s4 + $0x121] sm:$0xff] %vm17, %v2892
  %2991 = vst.msk [vmem:[%s4 + $0x129] sm:$0x7f] %vm2936, %v2893
  %2992 = vst.msk [vmem:[%s4 + $0x129] sm:$0x80] %vm2933, %v2894
  %2993 = vst.msk [vmem:[%s4 + $0x131] sm:$0xff] %vm17, %v2895
  %2994 = vst.msk [vmem:[%s4 + $0x139] sm:$0x7f] %vm2936, %v2896
  %2995 = vst.msk [vmem:[%s4 + $0x139] sm:$0x80] %vm2933, %v2897
  %2996 = vst.msk [vmem:[%s4 + $0x141] sm:$0xff] %vm17, %v2898
  %2997 = vst.msk [vmem:[%s4 + $0x149] sm:$0x7f] %vm2936, %v2899
  %2998 = vst.msk [vmem:[%s4 + $0x149] sm:$0x80] %vm2933, %v2900
  %2999 = vst.msk [vmem:[%s4 + $0x151] sm:$0xff] %vm17, %v2901
  %3000 = vst.msk [vmem:[%s4 + $0x159] sm:$0x7f] %vm2936, %v2902
  %3001 = vst.msk [vmem:[%s4 + $0x159] sm:$0x80] %vm2933, %v2903
  %3002 = vst.msk [vmem:[%s4 + $0x161] sm:$0xff] %vm17, %v2904
  %3003 = vst.msk [vmem:[%s4 + $0x169] sm:$0x7f] %vm2936, %v2905
  %3004 = vst.msk [vmem:[%s4 + $0x169] sm:$0x80] %vm2933, %v2906
  %3005 = vst.msk [vmem:[%s4 + $0x171] sm:$0xff] %vm17, %v2907
  %3006 = vst.msk [vmem:[%s4 + $0x179] sm:$0x7f] %vm2936, %v2908
  %3007 = vst.msk [vmem:[%s4 + $0x179] sm:$0x80] %vm2933, %v2909
  %3008 = vst.msk [vmem:[%s4 + $0x181] sm:$0xff] %vm17, %v2910
  %3009 = vst.msk [vmem:[%s4 + $0x189] sm:$0x7f] %vm2936, %v2911
  %3010 = vst.msk [vmem:[%s4 + $0x189] sm:$0x80] %vm2933, %v2912
  %3011 = vst.msk [vmem:[%s4 + $0x191] sm:$0xff] %vm17, %v2913
  %3012 = vst.msk [vmem:[%s4 + $0x199] sm:$0x7f] %vm2936, %v2914
  %3013 = vst.msk [vmem:[%s4 + $0x199] sm:$0x80] %vm2933, %v2915
  %3014 = vst.msk [vmem:[%s4 + $0x1a1] sm:$0xff] %vm17, %v2916
  %3015 = vst.msk [vmem:[%s4 + $0x1a9] sm:$0x7f] %vm2936, %v2917
  %3016 = vst.msk [vmem:[%s4 + $0x1a9] sm:$0x80] %vm2933, %v2918
  %3017 = vst.msk [vmem:[%s4 + $0x1b1] sm:$0xff] %vm17, %v2919
  %3018 = vst.msk [vmem:[%s4 + $0x1b9] sm:$0x7f] %vm2936, %v2920
  %3019 = vst.msk [vmem:[%s4 + $0x1b9] sm:$0x80] %vm2933, %v2921
  %3020 = vst.msk [vmem:[%s4 + $0x1c1] sm:$0xff] %vm17, %v2922
  %3021 = vst.msk [vmem:[%s4 + $0x1c9] sm:$0x7f] %vm2936, %v2923
  %3022 = vst.msk [vmem:[%s4 + $0x1c9] sm:$0x80] %vm2933, %v2924
  %3023 = vst.msk [vmem:[%s4 + $0x1d1] sm:$0xff] %vm17, %v2925
  %3024 = vst.msk [vmem:[%s4 + $0x1d9] sm:$0x7f] %vm2936, %v2926
  %3025 = vst.msk [vmem:[%s4 + $0x1d9] sm:$0x80] %vm2933, %v2927
  %3026 = vst.msk [vmem:[%s4 + $0x1e1] sm:$0xff] %vm17, %v2928
  %3027 = vst.msk [vmem:[%s4 + $0x1e9] sm:$0x7f] %vm2936, %v2929
  %3028 = vst.msk [vmem:[%s4 + $0x1e9] sm:$0x80] %vm2933, %v2930
  %3029 = vst.msk [vmem:[%s4 + $0x1f1] sm:$0xff] %vm17, %v2931
  %3030 = vst.msk [vmem:[%s4 + $0x1f9] sm:$0x7f] %vm2936, %v2932
  // Predicated region
  $region18: #{tpu_custom_call.1} parent=0 // pred_check
    _
  $region19: #{tpu_custom_call.1} parent=0 // pred_check_branch
    %3032 = sbr.rel (0) target = $region21
  $region20: #{tpu_custom_call.1} parent=0 // pred_region
    _
  $region21: #{tpu_custom_call.1} parent=0 // pred_fallthru
    _
  // Predicated region
  $region22: #{tpu_custom_call.1} parent=0 // pred_check
    _
  $region23: #{tpu_custom_call.1} parent=0 // pred_check_branch
    %3034 = sbr.rel (0) target = $region25
  $region24: #{tpu_custom_call.1} parent=0 // pred_region
    _
  $region25: #{tpu_custom_call.1} parent=0 // pred_fallthru
    _

</llo_original>
